<compile_context>
chip_gen: v6e
topology: v6e:2x2x1
jax: 0.10.0
libtpu: 0.0.40
codegen_flags: <defaults>
</compile_context>

<pallas_src>
import numpy as np
import jax
import jax.numpy as jnp
from jax import lax
from jax.experimental import pallas as pl
from jax.experimental.pallas import tpu as pltpu


def make_dual_block_kernel(depth, in_channels, nf):
    n_mid = depth - 2
    n_layers = depth

    def kernel(*refs):
        ax_ref, u_ref, y_ref = refs[0], refs[1], refs[2]
        w_refs = refs[3:3 + 2 * n_layers]
        out_ref = refs[-1]

        ax = ax_ref[...]
        chans = [ax, u_ref[...], y_ref[...]]          # cat((Ax_cur, u, y), dim=1)

        tb, L = ax.shape
        zcol = jnp.zeros((tb, 1), jnp.float32)        # hoisted, reused everywhere

        def shift_prev(x):
            # y[:, l] = x[:, l-1] for l >= 1, y[:, 0] = 0   (left zero-pad tap)
            return jnp.concatenate([zcol, x[:, : L - 1]], axis=-1)

        def shift_next(x):
            # y[:, l] = x[:, l+1] for l <= L-2, y[:, L-1] = 0 (right zero-pad tap)
            return jnp.concatenate([x[:, 1:], zcol], axis=-1)

        def conv1d_k3(xs, w_ref, b_ref, c_in, c_out, relu, residual=None):
            """Conv1d, kernel_size=3, stride=1, padding=1, bias=True.

            xs: python list of c_in arrays, each (tb, L)
            w_ref: SMEM ref, flat (c_out*c_in*3,), PyTorch (O, I, K) order
            b_ref: SMEM ref, (c_out,)
            residual: optional (tb, L) array folded into every output channel.
            """
            # Hoist all SMEM scalar reads ahead of the vector loops.
            ws = [[(w_ref[(co * c_in + ci) * 3 + 0],
                    w_ref[(co * c_in + ci) * 3 + 1],
                    w_ref[(co * c_in + ci) * 3 + 2])
                   for ci in range(c_in)] for co in range(c_out)]
            bs = [b_ref[co] for co in range(c_out)]

            if c_in <= c_out:
                # Mode A: shift the inputs (2*c_in lane shifts).
                accs = [None] * c_out
                # ci-outer / co-inner keeps the live vreg set small.
                for ci in range(c_in):
                    x = xs[ci]
                    xm1 = shift_prev(x)
                    xp1 = shift_next(x)
                    for co in range(c_out):
                        w0, w1, w2 = ws[co][ci]
                        contrib = w0 * xm1 + w1 * x + w2 * xp1
                        if accs[co] is None:
                            base = bs[co] if residual is None else residual + bs[co]
                            accs[co] = contrib + base    # bias folded into 1st MAC
                        else:
                            accs[co] = accs[co] + contrib
            else:
                # Mode B: shift the per-tap weighted sums (2*c_out lane shifts).
                accs = []
                for co in range(c_out):
                    tap0 = tap1 = tap2 = None
                    for ci in range(c_in):
                        w0, w1, w2 = ws[co][ci]
                        x = xs[ci]
                        tap0 = w0 * x if tap0 is None else tap0 + w0 * x
                        tap1 = w1 * x if tap1 is None else tap1 + w1 * x
                        tap2 = w2 * x if tap2 is None else tap2 + w2 * x
                    acc = shift_prev(tap0) + tap1 + shift_next(tap2) + bs[co]
                    if residual is not None:
                        acc = acc + residual
                    accs.append(acc)

            if relu:
                accs = [jnp.maximum(a, 0.0) for a in accs]
            return accs

        widx = 0
        w_in, b_in = w_refs[widx], w_refs[widx + 1]
        widx += 2
        h = conv1d_k3(chans, w_in, b_in, in_channels, nf, relu=True)

        for _ in range(n_mid):
            w_m, b_m = w_refs[widx], w_refs[widx + 1]
            widx += 2
            h = conv1d_k3(h, w_m, b_m, nf, nf, relu=True)

        w_o, b_o = w_refs[widx], w_refs[widx + 1]
        # Only channel 0 of out_conv is needed; Ax_cur residual folded in.
        out = conv1d_k3(h, w_o, b_o, nf, 1, relu=False, residual=ax)
        out_ref[...] = out[0]

    return kernel


def init_dual_block_params(key, in_channels=3, out_channels=1, depth=3, nf=5):
    """Deterministic init matching the PyTorch Conv1d shapes."""
    def conv_init(k, c_out, c_in, ksz=3):
        kw, kb = jax.random.split(k)
        bound = 1.0 / np.sqrt(c_in * ksz)
        w = jax.random.uniform(kw, (c_out, c_in, ksz), jnp.float32, -bound, bound)
        b = jax.random.uniform(kb, (c_out,), jnp.float32, -bound, bound)
        return w, b

    keys = jax.random.split(key, depth)
    params = {"in_conv": conv_init(keys[0], nf, in_channels)}
    params["mid_convs"] = [conv_init(keys[1 + i], nf, nf) for i in range(depth - 2)]
    params["out_conv"] = conv_init(keys[depth - 1], out_channels, nf)
    return params


def dual_block_forward(params, ax, u, y, *, in_channels=3, out_channels=1,
                       depth=3, nf=5, block_b=None):
    del out_channels  # forward only uses output channel 0
    B, L = ax.shape

    if block_b is None:
        # Small batches: one (<=128)-row block, single grid step.  Large
        # batches: 128-row blocks to amortize per-grid-step overhead.
        B8 = ((B + 7) // 8) * 8
        TB = int(min(B8, 128))
    else:
        TB = int(block_b)
    B_pad = ((B + TB - 1) // TB) * TB

    ax = ax.astype(jnp.float32)
    u = u.astype(jnp.float32)
    y = y.astype(jnp.float32)
    if B_pad != B:
        pad = ((0, B_pad - B), (0, 0))
        ax_p = jnp.pad(ax, pad)
        u_p = jnp.pad(u, pad)
        y_p = jnp.pad(y, pad)
    else:
        ax_p, u_p, y_p = ax, u, y

    flat_args = []
    for (w, b) in [params["in_conv"], *params["mid_convs"], params["out_conv"]]:
        flat_args.append(w.reshape(-1).astype(jnp.float32))
        flat_args.append(b.astype(jnp.float32))

    kernel = make_dual_block_kernel(depth, in_channels, nf)

    grid = (B_pad // TB,)
    vspec = pl.BlockSpec((TB, L), lambda i: (i, 0))
    smem = pl.BlockSpec(memory_space=pltpu.MemorySpace.SMEM)
    in_specs = [vspec, vspec, vspec] + [smem] * len(flat_args)

    out = pl.pallas_call(
        kernel,
        out_shape=jax.ShapeDtypeStruct((B_pad, L), jnp.float32),
        grid=grid,
        in_specs=in_specs,
        out_specs=vspec,
        compiler_params=pltpu.CompilerParams(
            dimension_semantics=("parallel",)),
    )(ax_p, u_p, y_p, *flat_args)

    return out[:B]


def dual_block_list_forward(params_list, ax, u, y, it, **kw):
    # DualBlock_list.forward: python-level ModuleList indexing by `it`
    return dual_block_forward(params_list[it], ax, u, y, **kw)


# ----- pure-JAX reference for correctness check -----
def _conv1d_ref(x, w, b):
    y = lax.conv_general_dilated(x, w, window_strides=(1,), padding=((1, 1),),
                                 dimension_numbers=("NCH", "OIH", "NCH"))
    return y + b[None, :, None]


def dual_block_ref(params, ax, u, y):
    x = jnp.stack([ax, u, y], axis=1)
    w, b = params["in_conv"]
    h = jax.nn.relu(_conv1d_ref(x, w, b))
    for (w, b) in params["mid_convs"]:
        h = jax.nn.relu(_conv1d_ref(h, w, b))
    w, b = params["out_conv"]
    o = _conv1d_ref(h, w, b) + ax[:, None, :]
    return o[:, 0, :]


if __name__ == "__main__":
    B, L = 2, 128
    max_it = 2
    it = 0

    key = jax.random.PRNGKey(0)
    k_ax, k_u, k_y, k_p = jax.random.split(key, 4)
    Ax_cur = jax.random.normal(k_ax, (B, L), jnp.float32)
    u = jax.random.normal(k_u, (B, L), jnp.float32)
    y = jax.random.normal(k_y, (B, L), jnp.float32)

    params_list = [init_dual_block_params(k) for k in jax.random.split(k_p, max_it)]

    out = dual_block_list_forward(params_list, Ax_cur, u, y, it)
    out = jax.block_until_ready(out)

    ref = dual_block_ref(params_list[it], Ax_cur, u, y)
    np.testing.assert_allclose(np.asarray(out), np.asarray(ref), rtol=1e-5, atol=1e-5)
    print("KERNEL_OK")
</pallas_src>

<mosaic_0001>
module attributes {stable_mosaic.version = 11 : i64} {
  func.func @kernel(%arg0: i32, %arg1: memref<8x128xf32, #tpu.memory_space<vmem>>, %arg2: memref<8x128xf32, #tpu.memory_space<vmem>>, %arg3: memref<8x128xf32, #tpu.memory_space<vmem>>, %arg4: memref<45xf32, #tpu.memory_space<smem>>, %arg5: memref<5xf32, #tpu.memory_space<smem>>, %arg6: memref<75xf32, #tpu.memory_space<smem>>, %arg7: memref<5xf32, #tpu.memory_space<smem>>, %arg8: memref<15xf32, #tpu.memory_space<smem>>, %arg9: memref<1xf32, #tpu.memory_space<smem>>, %arg10: memref<8x128xf32, #tpu.memory_space<vmem>>) attributes {dimension_semantics = [#tpu.dimension_semantics<parallel>], iteration_bounds = array<i64: 1>, scalar_prefetch = 0 : i64, scratch_operands = 0 : i64, tpu.core_type = #tpu.core_type<tc>, window_params = [{transform_indices = @transform_0, window_bounds = array<i64: 8, 128>}, {transform_indices = @transform_1, window_bounds = array<i64: 8, 128>}, {transform_indices = @transform_2, window_bounds = array<i64: 8, 128>}, {transform_indices = @transform_3, window_bounds = array<i64: 45>}, {transform_indices = @transform_4, window_bounds = array<i64: 5>}, {transform_indices = @transform_5, window_bounds = array<i64: 75>}, {transform_indices = @transform_6, window_bounds = array<i64: 5>}, {transform_indices = @transform_7, window_bounds = array<i64: 15>}, {transform_indices = @transform_8, window_bounds = array<i64: 1>}, {transform_indices = @transform_9, window_bounds = array<i64: 8, 128>}]} {
    %c0 = arith.constant 0 : index
    %c0_0 = arith.constant 0 : index
    %0 = vector.load %arg1[%c0, %c0_0] : memref<8x128xf32, #tpu.memory_space<vmem>>, vector<8x128xf32>
    %c0_1 = arith.constant 0 : index
    %c0_2 = arith.constant 0 : index
    %1 = vector.load %arg2[%c0_1, %c0_2] : memref<8x128xf32, #tpu.memory_space<vmem>>, vector<8x128xf32>
    %c0_3 = arith.constant 0 : index
    %c0_4 = arith.constant 0 : index
    %2 = vector.load %arg3[%c0_3, %c0_4] : memref<8x128xf32, #tpu.memory_space<vmem>>, vector<8x128xf32>
    %cst = arith.constant 0.000000e+00 : f32
    %3 = vector.broadcast %cst : f32 to vector<8x1xf32>
    %c0_5 = arith.constant 0 : index
    %4 = memref.load %arg4[%c0_5] : memref<45xf32, #tpu.memory_space<smem>>
    %c1 = arith.constant 1 : index
    %5 = memref.load %arg4[%c1] : memref<45xf32, #tpu.memory_space<smem>>
    %c2 = arith.constant 2 : index
    %6 = memref.load %arg4[%c2] : memref<45xf32, #tpu.memory_space<smem>>
    %c3 = arith.constant 3 : index
    %7 = memref.load %arg4[%c3] : memref<45xf32, #tpu.memory_space<smem>>
    %c4 = arith.constant 4 : index
    %8 = memref.load %arg4[%c4] : memref<45xf32, #tpu.memory_space<smem>>
    %c5 = arith.constant 5 : index
    %9 = memref.load %arg4[%c5] : memref<45xf32, #tpu.memory_space<smem>>
    %c6 = arith.constant 6 : index
    %10 = memref.load %arg4[%c6] : memref<45xf32, #tpu.memory_space<smem>>
    %c7 = arith.constant 7 : index
    %11 = memref.load %arg4[%c7] : memref<45xf32, #tpu.memory_space<smem>>
    %c8 = arith.constant 8 : index
    %12 = memref.load %arg4[%c8] : memref<45xf32, #tpu.memory_space<smem>>
    %c9 = arith.constant 9 : index
    %13 = memref.load %arg4[%c9] : memref<45xf32, #tpu.memory_space<smem>>
    %c10 = arith.constant 10 : index
    %14 = memref.load %arg4[%c10] : memref<45xf32, #tpu.memory_space<smem>>
    %c11 = arith.constant 11 : index
    %15 = memref.load %arg4[%c11] : memref<45xf32, #tpu.memory_space<smem>>
    %c12 = arith.constant 12 : index
    %16 = memref.load %arg4[%c12] : memref<45xf32, #tpu.memory_space<smem>>
    %c13 = arith.constant 13 : index
    %17 = memref.load %arg4[%c13] : memref<45xf32, #tpu.memory_space<smem>>
    %c14 = arith.constant 14 : index
    %18 = memref.load %arg4[%c14] : memref<45xf32, #tpu.memory_space<smem>>
    %c15 = arith.constant 15 : index
    %19 = memref.load %arg4[%c15] : memref<45xf32, #tpu.memory_space<smem>>
    %c16 = arith.constant 16 : index
    %20 = memref.load %arg4[%c16] : memref<45xf32, #tpu.memory_space<smem>>
    %c17 = arith.constant 17 : index
    %21 = memref.load %arg4[%c17] : memref<45xf32, #tpu.memory_space<smem>>
    %c18 = arith.constant 18 : index
    %22 = memref.load %arg4[%c18] : memref<45xf32, #tpu.memory_space<smem>>
    %c19 = arith.constant 19 : index
    %23 = memref.load %arg4[%c19] : memref<45xf32, #tpu.memory_space<smem>>
    %c20 = arith.constant 20 : index
    %24 = memref.load %arg4[%c20] : memref<45xf32, #tpu.memory_space<smem>>
    %c21 = arith.constant 21 : index
    %25 = memref.load %arg4[%c21] : memref<45xf32, #tpu.memory_space<smem>>
    %c22 = arith.constant 22 : index
    %26 = memref.load %arg4[%c22] : memref<45xf32, #tpu.memory_space<smem>>
    %c23 = arith.constant 23 : index
    %27 = memref.load %arg4[%c23] : memref<45xf32, #tpu.memory_space<smem>>
    %c24 = arith.constant 24 : index
    %28 = memref.load %arg4[%c24] : memref<45xf32, #tpu.memory_space<smem>>
    %c25 = arith.constant 25 : index
    %29 = memref.load %arg4[%c25] : memref<45xf32, #tpu.memory_space<smem>>
    %c26 = arith.constant 26 : index
    %30 = memref.load %arg4[%c26] : memref<45xf32, #tpu.memory_space<smem>>
    %c27 = arith.constant 27 : index
    %31 = memref.load %arg4[%c27] : memref<45xf32, #tpu.memory_space<smem>>
    %c28 = arith.constant 28 : index
    %32 = memref.load %arg4[%c28] : memref<45xf32, #tpu.memory_space<smem>>
    %c29 = arith.constant 29 : index
    %33 = memref.load %arg4[%c29] : memref<45xf32, #tpu.memory_space<smem>>
    %c30 = arith.constant 30 : index
    %34 = memref.load %arg4[%c30] : memref<45xf32, #tpu.memory_space<smem>>
    %c31 = arith.constant 31 : index
    %35 = memref.load %arg4[%c31] : memref<45xf32, #tpu.memory_space<smem>>
    %c32 = arith.constant 32 : index
    %36 = memref.load %arg4[%c32] : memref<45xf32, #tpu.memory_space<smem>>
    %c33 = arith.constant 33 : index
    %37 = memref.load %arg4[%c33] : memref<45xf32, #tpu.memory_space<smem>>
    %c34 = arith.constant 34 : index
    %38 = memref.load %arg4[%c34] : memref<45xf32, #tpu.memory_space<smem>>
    %c35 = arith.constant 35 : index
    %39 = memref.load %arg4[%c35] : memref<45xf32, #tpu.memory_space<smem>>
    %c36 = arith.constant 36 : index
    %40 = memref.load %arg4[%c36] : memref<45xf32, #tpu.memory_space<smem>>
    %c37 = arith.constant 37 : index
    %41 = memref.load %arg4[%c37] : memref<45xf32, #tpu.memory_space<smem>>
    %c38 = arith.constant 38 : index
    %42 = memref.load %arg4[%c38] : memref<45xf32, #tpu.memory_space<smem>>
    %c39 = arith.constant 39 : index
    %43 = memref.load %arg4[%c39] : memref<45xf32, #tpu.memory_space<smem>>
    %c40 = arith.constant 40 : index
    %44 = memref.load %arg4[%c40] : memref<45xf32, #tpu.memory_space<smem>>
    %c41 = arith.constant 41 : index
    %45 = memref.load %arg4[%c41] : memref<45xf32, #tpu.memory_space<smem>>
    %c42 = arith.constant 42 : index
    %46 = memref.load %arg4[%c42] : memref<45xf32, #tpu.memory_space<smem>>
    %c43 = arith.constant 43 : index
    %47 = memref.load %arg4[%c43] : memref<45xf32, #tpu.memory_space<smem>>
    %c44 = arith.constant 44 : index
    %48 = memref.load %arg4[%c44] : memref<45xf32, #tpu.memory_space<smem>>
    %c0_6 = arith.constant 0 : index
    %49 = memref.load %arg5[%c0_6] : memref<5xf32, #tpu.memory_space<smem>>
    %c1_7 = arith.constant 1 : index
    %50 = memref.load %arg5[%c1_7] : memref<5xf32, #tpu.memory_space<smem>>
    %c2_8 = arith.constant 2 : index
    %51 = memref.load %arg5[%c2_8] : memref<5xf32, #tpu.memory_space<smem>>
    %c3_9 = arith.constant 3 : index
    %52 = memref.load %arg5[%c3_9] : memref<5xf32, #tpu.memory_space<smem>>
    %c4_10 = arith.constant 4 : index
    %53 = memref.load %arg5[%c4_10] : memref<5xf32, #tpu.memory_space<smem>>
    %54 = vector.extract_strided_slice %0 {offsets = [0, 0], sizes = [8, 127], strides = [1, 1]} : vector<8x128xf32> to vector<8x127xf32>
    %55 = tpu.concatenate %3, %54 in 1 : vector<8x1xf32>, vector<8x127xf32> -> vector<8x128xf32>
    %56 = vector.extract_strided_slice %0 {offsets = [0, 1], sizes = [8, 127], strides = [1, 1]} : vector<8x128xf32> to vector<8x127xf32>
    %57 = tpu.concatenate %56, %3 in 1 : vector<8x127xf32>, vector<8x1xf32> -> vector<8x128xf32>
    %58 = vector.broadcast %4 : f32 to vector<8x128xf32>
    %59 = arith.mulf %58, %55 : vector<8x128xf32>
    %60 = vector.broadcast %5 : f32 to vector<8x128xf32>
    %61 = arith.mulf %60, %0 : vector<8x128xf32>
    %62 = arith.addf %59, %61 : vector<8x128xf32>
    %63 = vector.broadcast %6 : f32 to vector<8x128xf32>
    %64 = arith.mulf %63, %57 : vector<8x128xf32>
    %65 = arith.addf %62, %64 : vector<8x128xf32>
    %66 = vector.broadcast %49 : f32 to vector<8x128xf32>
    %67 = arith.addf %65, %66 : vector<8x128xf32>
    %68 = vector.broadcast %13 : f32 to vector<8x128xf32>
    %69 = arith.mulf %68, %55 : vector<8x128xf32>
    %70 = vector.broadcast %14 : f32 to vector<8x128xf32>
    %71 = arith.mulf %70, %0 : vector<8x128xf32>
    %72 = arith.addf %69, %71 : vector<8x128xf32>
    %73 = vector.broadcast %15 : f32 to vector<8x128xf32>
    %74 = arith.mulf %73, %57 : vector<8x128xf32>
    %75 = arith.addf %72, %74 : vector<8x128xf32>
    %76 = vector.broadcast %50 : f32 to vector<8x128xf32>
    %77 = arith.addf %75, %76 : vector<8x128xf32>
    %78 = vector.broadcast %22 : f32 to vector<8x128xf32>
    %79 = arith.mulf %78, %55 : vector<8x128xf32>
    %80 = vector.broadcast %23 : f32 to vector<8x128xf32>
    %81 = arith.mulf %80, %0 : vector<8x128xf32>
    %82 = arith.addf %79, %81 : vector<8x128xf32>
    %83 = vector.broadcast %24 : f32 to vector<8x128xf32>
    %84 = arith.mulf %83, %57 : vector<8x128xf32>
    %85 = arith.addf %82, %84 : vector<8x128xf32>
    %86 = vector.broadcast %51 : f32 to vector<8x128xf32>
    %87 = arith.addf %85, %86 : vector<8x128xf32>
    %88 = vector.broadcast %31 : f32 to vector<8x128xf32>
    %89 = arith.mulf %88, %55 : vector<8x128xf32>
    %90 = vector.broadcast %32 : f32 to vector<8x128xf32>
    %91 = arith.mulf %90, %0 : vector<8x128xf32>
    %92 = arith.addf %89, %91 : vector<8x128xf32>
    %93 = vector.broadcast %33 : f32 to vector<8x128xf32>
    %94 = arith.mulf %93, %57 : vector<8x128xf32>
    %95 = arith.addf %92, %94 : vector<8x128xf32>
    %96 = vector.broadcast %52 : f32 to vector<8x128xf32>
    %97 = arith.addf %95, %96 : vector<8x128xf32>
    %98 = vector.broadcast %40 : f32 to vector<8x128xf32>
    %99 = arith.mulf %98, %55 : vector<8x128xf32>
    %100 = vector.broadcast %41 : f32 to vector<8x128xf32>
    %101 = arith.mulf %100, %0 : vector<8x128xf32>
    %102 = arith.addf %99, %101 : vector<8x128xf32>
    %103 = vector.broadcast %42 : f32 to vector<8x128xf32>
    %104 = arith.mulf %103, %57 : vector<8x128xf32>
    %105 = arith.addf %102, %104 : vector<8x128xf32>
    %106 = vector.broadcast %53 : f32 to vector<8x128xf32>
    %107 = arith.addf %105, %106 : vector<8x128xf32>
    %108 = vector.extract_strided_slice %1 {offsets = [0, 0], sizes = [8, 127], strides = [1, 1]} : vector<8x128xf32> to vector<8x127xf32>
    %109 = tpu.concatenate %3, %108 in 1 : vector<8x1xf32>, vector<8x127xf32> -> vector<8x128xf32>
    %110 = vector.extract_strided_slice %1 {offsets = [0, 1], sizes = [8, 127], strides = [1, 1]} : vector<8x128xf32> to vector<8x127xf32>
    %111 = tpu.concatenate %110, %3 in 1 : vector<8x127xf32>, vector<8x1xf32> -> vector<8x128xf32>
    %112 = vector.broadcast %7 : f32 to vector<8x128xf32>
    %113 = arith.mulf %112, %109 : vector<8x128xf32>
    %114 = vector.broadcast %8 : f32 to vector<8x128xf32>
    %115 = arith.mulf %114, %1 : vector<8x128xf32>
    %116 = arith.addf %113, %115 : vector<8x128xf32>
    %117 = vector.broadcast %9 : f32 to vector<8x128xf32>
    %118 = arith.mulf %117, %111 : vector<8x128xf32>
    %119 = arith.addf %116, %118 : vector<8x128xf32>
    %120 = arith.addf %67, %119 : vector<8x128xf32>
    %121 = vector.broadcast %16 : f32 to vector<8x128xf32>
    %122 = arith.mulf %121, %109 : vector<8x128xf32>
    %123 = vector.broadcast %17 : f32 to vector<8x128xf32>
    %124 = arith.mulf %123, %1 : vector<8x128xf32>
    %125 = arith.addf %122, %124 : vector<8x128xf32>
    %126 = vector.broadcast %18 : f32 to vector<8x128xf32>
    %127 = arith.mulf %126, %111 : vector<8x128xf32>
    %128 = arith.addf %125, %127 : vector<8x128xf32>
    %129 = arith.addf %77, %128 : vector<8x128xf32>
    %130 = vector.broadcast %25 : f32 to vector<8x128xf32>
    %131 = arith.mulf %130, %109 : vector<8x128xf32>
    %132 = vector.broadcast %26 : f32 to vector<8x128xf32>
    %133 = arith.mulf %132, %1 : vector<8x128xf32>
    %134 = arith.addf %131, %133 : vector<8x128xf32>
    %135 = vector.broadcast %27 : f32 to vector<8x128xf32>
    %136 = arith.mulf %135, %111 : vector<8x128xf32>
    %137 = arith.addf %134, %136 : vector<8x128xf32>
    %138 = arith.addf %87, %137 : vector<8x128xf32>
    %139 = vector.broadcast %34 : f32 to vector<8x128xf32>
    %140 = arith.mulf %139, %109 : vector<8x128xf32>
    %141 = vector.broadcast %35 : f32 to vector<8x128xf32>
    %142 = arith.mulf %141, %1 : vector<8x128xf32>
    %143 = arith.addf %140, %142 : vector<8x128xf32>
    %144 = vector.broadcast %36 : f32 to vector<8x128xf32>
    %145 = arith.mulf %144, %111 : vector<8x128xf32>
    %146 = arith.addf %143, %145 : vector<8x128xf32>
    %147 = arith.addf %97, %146 : vector<8x128xf32>
    %148 = vector.broadcast %43 : f32 to vector<8x128xf32>
    %149 = arith.mulf %148, %109 : vector<8x128xf32>
    %150 = vector.broadcast %44 : f32 to vector<8x128xf32>
    %151 = arith.mulf %150, %1 : vector<8x128xf32>
    %152 = arith.addf %149, %151 : vector<8x128xf32>
    %153 = vector.broadcast %45 : f32 to vector<8x128xf32>
    %154 = arith.mulf %153, %111 : vector<8x128xf32>
    %155 = arith.addf %152, %154 : vector<8x128xf32>
    %156 = arith.addf %107, %155 : vector<8x128xf32>
    %157 = vector.extract_strided_slice %2 {offsets = [0, 0], sizes = [8, 127], strides = [1, 1]} : vector<8x128xf32> to vector<8x127xf32>
    %158 = tpu.concatenate %3, %157 in 1 : vector<8x1xf32>, vector<8x127xf32> -> vector<8x128xf32>
    %159 = vector.extract_strided_slice %2 {offsets = [0, 1], sizes = [8, 127], strides = [1, 1]} : vector<8x128xf32> to vector<8x127xf32>
    %160 = tpu.concatenate %159, %3 in 1 : vector<8x127xf32>, vector<8x1xf32> -> vector<8x128xf32>
    %161 = vector.broadcast %10 : f32 to vector<8x128xf32>
    %162 = arith.mulf %161, %158 : vector<8x128xf32>
    %163 = vector.broadcast %11 : f32 to vector<8x128xf32>
    %164 = arith.mulf %163, %2 : vector<8x128xf32>
    %165 = arith.addf %162, %164 : vector<8x128xf32>
    %166 = vector.broadcast %12 : f32 to vector<8x128xf32>
    %167 = arith.mulf %166, %160 : vector<8x128xf32>
    %168 = arith.addf %165, %167 : vector<8x128xf32>
    %169 = arith.addf %120, %168 : vector<8x128xf32>
    %170 = vector.broadcast %19 : f32 to vector<8x128xf32>
    %171 = arith.mulf %170, %158 : vector<8x128xf32>
    %172 = vector.broadcast %20 : f32 to vector<8x128xf32>
    %173 = arith.mulf %172, %2 : vector<8x128xf32>
    %174 = arith.addf %171, %173 : vector<8x128xf32>
    %175 = vector.broadcast %21 : f32 to vector<8x128xf32>
    %176 = arith.mulf %175, %160 : vector<8x128xf32>
    %177 = arith.addf %174, %176 : vector<8x128xf32>
    %178 = arith.addf %129, %177 : vector<8x128xf32>
    %179 = vector.broadcast %28 : f32 to vector<8x128xf32>
    %180 = arith.mulf %179, %158 : vector<8x128xf32>
    %181 = vector.broadcast %29 : f32 to vector<8x128xf32>
    %182 = arith.mulf %181, %2 : vector<8x128xf32>
    %183 = arith.addf %180, %182 : vector<8x128xf32>
    %184 = vector.broadcast %30 : f32 to vector<8x128xf32>
    %185 = arith.mulf %184, %160 : vector<8x128xf32>
    %186 = arith.addf %183, %185 : vector<8x128xf32>
    %187 = arith.addf %138, %186 : vector<8x128xf32>
    %188 = vector.broadcast %37 : f32 to vector<8x128xf32>
    %189 = arith.mulf %188, %158 : vector<8x128xf32>
    %190 = vector.broadcast %38 : f32 to vector<8x128xf32>
    %191 = arith.mulf %190, %2 : vector<8x128xf32>
    %192 = arith.addf %189, %191 : vector<8x128xf32>
    %193 = vector.broadcast %39 : f32 to vector<8x128xf32>
    %194 = arith.mulf %193, %160 : vector<8x128xf32>
    %195 = arith.addf %192, %194 : vector<8x128xf32>
    %196 = arith.addf %147, %195 : vector<8x128xf32>
    %197 = vector.broadcast %46 : f32 to vector<8x128xf32>
    %198 = arith.mulf %197, %158 : vector<8x128xf32>
    %199 = vector.broadcast %47 : f32 to vector<8x128xf32>
    %200 = arith.mulf %199, %2 : vector<8x128xf32>
    %201 = arith.addf %198, %200 : vector<8x128xf32>
    %202 = vector.broadcast %48 : f32 to vector<8x128xf32>
    %203 = arith.mulf %202, %160 : vector<8x128xf32>
    %204 = arith.addf %201, %203 : vector<8x128xf32>
    %205 = arith.addf %156, %204 : vector<8x128xf32>
    %cst_11 = arith.constant 0.000000e+00 : f32
    %206 = vector.broadcast %cst_11 : f32 to vector<8x128xf32>
    %207 = arith.maximumf %169, %206 : vector<8x128xf32>
    %cst_12 = arith.constant 0.000000e+00 : f32
    %208 = vector.broadcast %cst_12 : f32 to vector<8x128xf32>
    %209 = arith.maximumf %178, %208 : vector<8x128xf32>
    %cst_13 = arith.constant 0.000000e+00 : f32
    %210 = vector.broadcast %cst_13 : f32 to vector<8x128xf32>
    %211 = arith.maximumf %187, %210 : vector<8x128xf32>
    %cst_14 = arith.constant 0.000000e+00 : f32
    %212 = vector.broadcast %cst_14 : f32 to vector<8x128xf32>
    %213 = arith.maximumf %196, %212 : vector<8x128xf32>
    %cst_15 = arith.constant 0.000000e+00 : f32
    %214 = vector.broadcast %cst_15 : f32 to vector<8x128xf32>
    %215 = arith.maximumf %205, %214 : vector<8x128xf32>
    %c0_16 = arith.constant 0 : index
    %216 = memref.load %arg6[%c0_16] : memref<75xf32, #tpu.memory_space<smem>>
    %c1_17 = arith.constant 1 : index
    %217 = memref.load %arg6[%c1_17] : memref<75xf32, #tpu.memory_space<smem>>
    %c2_18 = arith.constant 2 : index
    %218 = memref.load %arg6[%c2_18] : memref<75xf32, #tpu.memory_space<smem>>
    %c3_19 = arith.constant 3 : index
    %219 = memref.load %arg6[%c3_19] : memref<75xf32, #tpu.memory_space<smem>>
    %c4_20 = arith.constant 4 : index
    %220 = memref.load %arg6[%c4_20] : memref<75xf32, #tpu.memory_space<smem>>
    %c5_21 = arith.constant 5 : index
    %221 = memref.load %arg6[%c5_21] : memref<75xf32, #tpu.memory_space<smem>>
    %c6_22 = arith.constant 6 : index
    %222 = memref.load %arg6[%c6_22] : memref<75xf32, #tpu.memory_space<smem>>
    %c7_23 = arith.constant 7 : index
    %223 = memref.load %arg6[%c7_23] : memref<75xf32, #tpu.memory_space<smem>>
    %c8_24 = arith.constant 8 : index
    %224 = memref.load %arg6[%c8_24] : memref<75xf32, #tpu.memory_space<smem>>
    %c9_25 = arith.constant 9 : index
    %225 = memref.load %arg6[%c9_25] : memref<75xf32, #tpu.memory_space<smem>>
    %c10_26 = arith.constant 10 : index
    %226 = memref.load %arg6[%c10_26] : memref<75xf32, #tpu.memory_space<smem>>
    %c11_27 = arith.constant 11 : index
    %227 = memref.load %arg6[%c11_27] : memref<75xf32, #tpu.memory_space<smem>>
    %c12_28 = arith.constant 12 : index
    %228 = memref.load %arg6[%c12_28] : memref<75xf32, #tpu.memory_space<smem>>
    %c13_29 = arith.constant 13 : index
    %229 = memref.load %arg6[%c13_29] : memref<75xf32, #tpu.memory_space<smem>>
    %c14_30 = arith.constant 14 : index
    %230 = memref.load %arg6[%c14_30] : memref<75xf32, #tpu.memory_space<smem>>
    %c15_31 = arith.constant 15 : index
    %231 = memref.load %arg6[%c15_31] : memref<75xf32, #tpu.memory_space<smem>>
    %c16_32 = arith.constant 16 : index
    %232 = memref.load %arg6[%c16_32] : memref<75xf32, #tpu.memory_space<smem>>
    %c17_33 = arith.constant 17 : index
    %233 = memref.load %arg6[%c17_33] : memref<75xf32, #tpu.memory_space<smem>>
    %c18_34 = arith.constant 18 : index
    %234 = memref.load %arg6[%c18_34] : memref<75xf32, #tpu.memory_space<smem>>
    %c19_35 = arith.constant 19 : index
    %235 = memref.load %arg6[%c19_35] : memref<75xf32, #tpu.memory_space<smem>>
    %c20_36 = arith.constant 20 : index
    %236 = memref.load %arg6[%c20_36] : memref<75xf32, #tpu.memory_space<smem>>
    %c21_37 = arith.constant 21 : index
    %237 = memref.load %arg6[%c21_37] : memref<75xf32, #tpu.memory_space<smem>>
    %c22_38 = arith.constant 22 : index
    %238 = memref.load %arg6[%c22_38] : memref<75xf32, #tpu.memory_space<smem>>
    %c23_39 = arith.constant 23 : index
    %239 = memref.load %arg6[%c23_39] : memref<75xf32, #tpu.memory_space<smem>>
    %c24_40 = arith.constant 24 : index
    %240 = memref.load %arg6[%c24_40] : memref<75xf32, #tpu.memory_space<smem>>
    %c25_41 = arith.constant 25 : index
    %241 = memref.load %arg6[%c25_41] : memref<75xf32, #tpu.memory_space<smem>>
    %c26_42 = arith.constant 26 : index
    %242 = memref.load %arg6[%c26_42] : memref<75xf32, #tpu.memory_space<smem>>
    %c27_43 = arith.constant 27 : index
    %243 = memref.load %arg6[%c27_43] : memref<75xf32, #tpu.memory_space<smem>>
    %c28_44 = arith.constant 28 : index
    %244 = memref.load %arg6[%c28_44] : memref<75xf32, #tpu.memory_space<smem>>
    %c29_45 = arith.constant 29 : index
    %245 = memref.load %arg6[%c29_45] : memref<75xf32, #tpu.memory_space<smem>>
    %c30_46 = arith.constant 30 : index
    %246 = memref.load %arg6[%c30_46] : memref<75xf32, #tpu.memory_space<smem>>
    %c31_47 = arith.constant 31 : index
    %247 = memref.load %arg6[%c31_47] : memref<75xf32, #tpu.memory_space<smem>>
    %c32_48 = arith.constant 32 : index
    %248 = memref.load %arg6[%c32_48] : memref<75xf32, #tpu.memory_space<smem>>
    %c33_49 = arith.constant 33 : index
    %249 = memref.load %arg6[%c33_49] : memref<75xf32, #tpu.memory_space<smem>>
    %c34_50 = arith.constant 34 : index
    %250 = memref.load %arg6[%c34_50] : memref<75xf32, #tpu.memory_space<smem>>
    %c35_51 = arith.constant 35 : index
    %251 = memref.load %arg6[%c35_51] : memref<75xf32, #tpu.memory_space<smem>>
    %c36_52 = arith.constant 36 : index
    %252 = memref.load %arg6[%c36_52] : memref<75xf32, #tpu.memory_space<smem>>
    %c37_53 = arith.constant 37 : index
    %253 = memref.load %arg6[%c37_53] : memref<75xf32, #tpu.memory_space<smem>>
    %c38_54 = arith.constant 38 : index
    %254 = memref.load %arg6[%c38_54] : memref<75xf32, #tpu.memory_space<smem>>
    %c39_55 = arith.constant 39 : index
    %255 = memref.load %arg6[%c39_55] : memref<75xf32, #tpu.memory_space<smem>>
    %c40_56 = arith.constant 40 : index
    %256 = memref.load %arg6[%c40_56] : memref<75xf32, #tpu.memory_space<smem>>
    %c41_57 = arith.constant 41 : index
    %257 = memref.load %arg6[%c41_57] : memref<75xf32, #tpu.memory_space<smem>>
    %c42_58 = arith.constant 42 : index
    %258 = memref.load %arg6[%c42_58] : memref<75xf32, #tpu.memory_space<smem>>
    %c43_59 = arith.constant 43 : index
    %259 = memref.load %arg6[%c43_59] : memref<75xf32, #tpu.memory_space<smem>>
    %c44_60 = arith.constant 44 : index
    %260 = memref.load %arg6[%c44_60] : memref<75xf32, #tpu.memory_space<smem>>
    %c45 = arith.constant 45 : index
    %261 = memref.load %arg6[%c45] : memref<75xf32, #tpu.memory_space<smem>>
    %c46 = arith.constant 46 : index
    %262 = memref.load %arg6[%c46] : memref<75xf32, #tpu.memory_space<smem>>
    %c47 = arith.constant 47 : index
    %263 = memref.load %arg6[%c47] : memref<75xf32, #tpu.memory_space<smem>>
    %c48 = arith.constant 48 : index
    %264 = memref.load %arg6[%c48] : memref<75xf32, #tpu.memory_space<smem>>
    %c49 = arith.constant 49 : index
    %265 = memref.load %arg6[%c49] : memref<75xf32, #tpu.memory_space<smem>>
    %c50 = arith.constant 50 : index
    %266 = memref.load %arg6[%c50] : memref<75xf32, #tpu.memory_space<smem>>
    %c51 = arith.constant 51 : index
    %267 = memref.load %arg6[%c51] : memref<75xf32, #tpu.memory_space<smem>>
    %c52 = arith.constant 52 : index
    %268 = memref.load %arg6[%c52] : memref<75xf32, #tpu.memory_space<smem>>
    %c53 = arith.constant 53 : index
    %269 = memref.load %arg6[%c53] : memref<75xf32, #tpu.memory_space<smem>>
    %c54 = arith.constant 54 : index
    %270 = memref.load %arg6[%c54] : memref<75xf32, #tpu.memory_space<smem>>
    %c55 = arith.constant 55 : index
    %271 = memref.load %arg6[%c55] : memref<75xf32, #tpu.memory_space<smem>>
    %c56 = arith.constant 56 : index
    %272 = memref.load %arg6[%c56] : memref<75xf32, #tpu.memory_space<smem>>
    %c57 = arith.constant 57 : index
    %273 = memref.load %arg6[%c57] : memref<75xf32, #tpu.memory_space<smem>>
    %c58 = arith.constant 58 : index
    %274 = memref.load %arg6[%c58] : memref<75xf32, #tpu.memory_space<smem>>
    %c59 = arith.constant 59 : index
    %275 = memref.load %arg6[%c59] : memref<75xf32, #tpu.memory_space<smem>>
    %c60 = arith.constant 60 : index
    %276 = memref.load %arg6[%c60] : memref<75xf32, #tpu.memory_space<smem>>
    %c61 = arith.constant 61 : index
    %277 = memref.load %arg6[%c61] : memref<75xf32, #tpu.memory_space<smem>>
    %c62 = arith.constant 62 : index
    %278 = memref.load %arg6[%c62] : memref<75xf32, #tpu.memory_space<smem>>
    %c63 = arith.constant 63 : index
    %279 = memref.load %arg6[%c63] : memref<75xf32, #tpu.memory_space<smem>>
    %c64 = arith.constant 64 : index
    %280 = memref.load %arg6[%c64] : memref<75xf32, #tpu.memory_space<smem>>
    %c65 = arith.constant 65 : index
    %281 = memref.load %arg6[%c65] : memref<75xf32, #tpu.memory_space<smem>>
    %c66 = arith.constant 66 : index
    %282 = memref.load %arg6[%c66] : memref<75xf32, #tpu.memory_space<smem>>
    %c67 = arith.constant 67 : index
    %283 = memref.load %arg6[%c67] : memref<75xf32, #tpu.memory_space<smem>>
    %c68 = arith.constant 68 : index
    %284 = memref.load %arg6[%c68] : memref<75xf32, #tpu.memory_space<smem>>
    %c69 = arith.constant 69 : index
    %285 = memref.load %arg6[%c69] : memref<75xf32, #tpu.memory_space<smem>>
    %c70 = arith.constant 70 : index
    %286 = memref.load %arg6[%c70] : memref<75xf32, #tpu.memory_space<smem>>
    %c71 = arith.constant 71 : index
    %287 = memref.load %arg6[%c71] : memref<75xf32, #tpu.memory_space<smem>>
    %c72 = arith.constant 72 : index
    %288 = memref.load %arg6[%c72] : memref<75xf32, #tpu.memory_space<smem>>
    %c73 = arith.constant 73 : index
    %289 = memref.load %arg6[%c73] : memref<75xf32, #tpu.memory_space<smem>>
    %c74 = arith.constant 74 : index
    %290 = memref.load %arg6[%c74] : memref<75xf32, #tpu.memory_space<smem>>
    %c0_61 = arith.constant 0 : index
    %291 = memref.load %arg7[%c0_61] : memref<5xf32, #tpu.memory_space<smem>>
    %c1_62 = arith.constant 1 : index
    %292 = memref.load %arg7[%c1_62] : memref<5xf32, #tpu.memory_space<smem>>
    %c2_63 = arith.constant 2 : index
    %293 = memref.load %arg7[%c2_63] : memref<5xf32, #tpu.memory_space<smem>>
    %c3_64 = arith.constant 3 : index
    %294 = memref.load %arg7[%c3_64] : memref<5xf32, #tpu.memory_space<smem>>
    %c4_65 = arith.constant 4 : index
    %295 = memref.load %arg7[%c4_65] : memref<5xf32, #tpu.memory_space<smem>>
    %296 = vector.extract_strided_slice %207 {offsets = [0, 0], sizes = [8, 127], strides = [1, 1]} : vector<8x128xf32> to vector<8x127xf32>
    %297 = tpu.concatenate %3, %296 in 1 : vector<8x1xf32>, vector<8x127xf32> -> vector<8x128xf32>
    %298 = vector.extract_strided_slice %207 {offsets = [0, 1], sizes = [8, 127], strides = [1, 1]} : vector<8x128xf32> to vector<8x127xf32>
    %299 = tpu.concatenate %298, %3 in 1 : vector<8x127xf32>, vector<8x1xf32> -> vector<8x128xf32>
    %300 = vector.broadcast %216 : f32 to vector<8x128xf32>
    %301 = arith.mulf %300, %297 : vector<8x128xf32>
    %302 = vector.broadcast %217 : f32 to vector<8x128xf32>
    %303 = arith.mulf %302, %207 : vector<8x128xf32>
    %304 = arith.addf %301, %303 : vector<8x128xf32>
    %305 = vector.broadcast %218 : f32 to vector<8x128xf32>
    %306 = arith.mulf %305, %299 : vector<8x128xf32>
    %307 = arith.addf %304, %306 : vector<8x128xf32>
    %308 = vector.broadcast %291 : f32 to vector<8x128xf32>
    %309 = arith.addf %307, %308 : vector<8x128xf32>
    %310 = vector.broadcast %231 : f32 to vector<8x128xf32>
    %311 = arith.mulf %310, %297 : vector<8x128xf32>
    %312 = vector.broadcast %232 : f32 to vector<8x128xf32>
    %313 = arith.mulf %312, %207 : vector<8x128xf32>
    %314 = arith.addf %311, %313 : vector<8x128xf32>
    %315 = vector.broadcast %233 : f32 to vector<8x128xf32>
    %316 = arith.mulf %315, %299 : vector<8x128xf32>
    %317 = arith.addf %314, %316 : vector<8x128xf32>
    %318 = vector.broadcast %292 : f32 to vector<8x128xf32>
    %319 = arith.addf %317, %318 : vector<8x128xf32>
    %320 = vector.broadcast %246 : f32 to vector<8x128xf32>
    %321 = arith.mulf %320, %297 : vector<8x128xf32>
    %322 = vector.broadcast %247 : f32 to vector<8x128xf32>
    %323 = arith.mulf %322, %207 : vector<8x128xf32>
    %324 = arith.addf %321, %323 : vector<8x128xf32>
    %325 = vector.broadcast %248 : f32 to vector<8x128xf32>
    %326 = arith.mulf %325, %299 : vector<8x128xf32>
    %327 = arith.addf %324, %326 : vector<8x128xf32>
    %328 = vector.broadcast %293 : f32 to vector<8x128xf32>
    %329 = arith.addf %327, %328 : vector<8x128xf32>
    %330 = vector.broadcast %261 : f32 to vector<8x128xf32>
    %331 = arith.mulf %330, %297 : vector<8x128xf32>
    %332 = vector.broadcast %262 : f32 to vector<8x128xf32>
    %333 = arith.mulf %332, %207 : vector<8x128xf32>
    %334 = arith.addf %331, %333 : vector<8x128xf32>
    %335 = vector.broadcast %263 : f32 to vector<8x128xf32>
    %336 = arith.mulf %335, %299 : vector<8x128xf32>
    %337 = arith.addf %334, %336 : vector<8x128xf32>
    %338 = vector.broadcast %294 : f32 to vector<8x128xf32>
    %339 = arith.addf %337, %338 : vector<8x128xf32>
    %340 = vector.broadcast %276 : f32 to vector<8x128xf32>
    %341 = arith.mulf %340, %297 : vector<8x128xf32>
    %342 = vector.broadcast %277 : f32 to vector<8x128xf32>
    %343 = arith.mulf %342, %207 : vector<8x128xf32>
    %344 = arith.addf %341, %343 : vector<8x128xf32>
    %345 = vector.broadcast %278 : f32 to vector<8x128xf32>
    %346 = arith.mulf %345, %299 : vector<8x128xf32>
    %347 = arith.addf %344, %346 : vector<8x128xf32>
    %348 = vector.broadcast %295 : f32 to vector<8x128xf32>
    %349 = arith.addf %347, %348 : vector<8x128xf32>
    %350 = vector.extract_strided_slice %209 {offsets = [0, 0], sizes = [8, 127], strides = [1, 1]} : vector<8x128xf32> to vector<8x127xf32>
    %351 = tpu.concatenate %3, %350 in 1 : vector<8x1xf32>, vector<8x127xf32> -> vector<8x128xf32>
    %352 = vector.extract_strided_slice %209 {offsets = [0, 1], sizes = [8, 127], strides = [1, 1]} : vector<8x128xf32> to vector<8x127xf32>
    %353 = tpu.concatenate %352, %3 in 1 : vector<8x127xf32>, vector<8x1xf32> -> vector<8x128xf32>
    %354 = vector.broadcast %219 : f32 to vector<8x128xf32>
    %355 = arith.mulf %354, %351 : vector<8x128xf32>
    %356 = vector.broadcast %220 : f32 to vector<8x128xf32>
    %357 = arith.mulf %356, %209 : vector<8x128xf32>
    %358 = arith.addf %355, %357 : vector<8x128xf32>
    %359 = vector.broadcast %221 : f32 to vector<8x128xf32>
    %360 = arith.mulf %359, %353 : vector<8x128xf32>
    %361 = arith.addf %358, %360 : vector<8x128xf32>
    %362 = arith.addf %309, %361 : vector<8x128xf32>
    %363 = vector.broadcast %234 : f32 to vector<8x128xf32>
    %364 = arith.mulf %363, %351 : vector<8x128xf32>
    %365 = vector.broadcast %235 : f32 to vector<8x128xf32>
    %366 = arith.mulf %365, %209 : vector<8x128xf32>
    %367 = arith.addf %364, %366 : vector<8x128xf32>
    %368 = vector.broadcast %236 : f32 to vector<8x128xf32>
    %369 = arith.mulf %368, %353 : vector<8x128xf32>
    %370 = arith.addf %367, %369 : vector<8x128xf32>
    %371 = arith.addf %319, %370 : vector<8x128xf32>
    %372 = vector.broadcast %249 : f32 to vector<8x128xf32>
    %373 = arith.mulf %372, %351 : vector<8x128xf32>
    %374 = vector.broadcast %250 : f32 to vector<8x128xf32>
    %375 = arith.mulf %374, %209 : vector<8x128xf32>
    %376 = arith.addf %373, %375 : vector<8x128xf32>
    %377 = vector.broadcast %251 : f32 to vector<8x128xf32>
    %378 = arith.mulf %377, %353 : vector<8x128xf32>
    %379 = arith.addf %376, %378 : vector<8x128xf32>
    %380 = arith.addf %329, %379 : vector<8x128xf32>
    %381 = vector.broadcast %264 : f32 to vector<8x128xf32>
    %382 = arith.mulf %381, %351 : vector<8x128xf32>
    %383 = vector.broadcast %265 : f32 to vector<8x128xf32>
    %384 = arith.mulf %383, %209 : vector<8x128xf32>
    %385 = arith.addf %382, %384 : vector<8x128xf32>
    %386 = vector.broadcast %266 : f32 to vector<8x128xf32>
    %387 = arith.mulf %386, %353 : vector<8x128xf32>
    %388 = arith.addf %385, %387 : vector<8x128xf32>
    %389 = arith.addf %339, %388 : vector<8x128xf32>
    %390 = vector.broadcast %279 : f32 to vector<8x128xf32>
    %391 = arith.mulf %390, %351 : vector<8x128xf32>
    %392 = vector.broadcast %280 : f32 to vector<8x128xf32>
    %393 = arith.mulf %392, %209 : vector<8x128xf32>
    %394 = arith.addf %391, %393 : vector<8x128xf32>
    %395 = vector.broadcast %281 : f32 to vector<8x128xf32>
    %396 = arith.mulf %395, %353 : vector<8x128xf32>
    %397 = arith.addf %394, %396 : vector<8x128xf32>
    %398 = arith.addf %349, %397 : vector<8x128xf32>
    %399 = vector.extract_strided_slice %211 {offsets = [0, 0], sizes = [8, 127], strides = [1, 1]} : vector<8x128xf32> to vector<8x127xf32>
    %400 = tpu.concatenate %3, %399 in 1 : vector<8x1xf32>, vector<8x127xf32> -> vector<8x128xf32>
    %401 = vector.extract_strided_slice %211 {offsets = [0, 1], sizes = [8, 127], strides = [1, 1]} : vector<8x128xf32> to vector<8x127xf32>
    %402 = tpu.concatenate %401, %3 in 1 : vector<8x127xf32>, vector<8x1xf32> -> vector<8x128xf32>
    %403 = vector.broadcast %222 : f32 to vector<8x128xf32>
    %404 = arith.mulf %403, %400 : vector<8x128xf32>
    %405 = vector.broadcast %223 : f32 to vector<8x128xf32>
    %406 = arith.mulf %405, %211 : vector<8x128xf32>
    %407 = arith.addf %404, %406 : vector<8x128xf32>
    %408 = vector.broadcast %224 : f32 to vector<8x128xf32>
    %409 = arith.mulf %408, %402 : vector<8x128xf32>
    %410 = arith.addf %407, %409 : vector<8x128xf32>
    %411 = arith.addf %362, %410 : vector<8x128xf32>
    %412 = vector.broadcast %237 : f32 to vector<8x128xf32>
    %413 = arith.mulf %412, %400 : vector<8x128xf32>
    %414 = vector.broadcast %238 : f32 to vector<8x128xf32>
    %415 = arith.mulf %414, %211 : vector<8x128xf32>
    %416 = arith.addf %413, %415 : vector<8x128xf32>
    %417 = vector.broadcast %239 : f32 to vector<8x128xf32>
    %418 = arith.mulf %417, %402 : vector<8x128xf32>
    %419 = arith.addf %416, %418 : vector<8x128xf32>
    %420 = arith.addf %371, %419 : vector<8x128xf32>
    %421 = vector.broadcast %252 : f32 to vector<8x128xf32>
    %422 = arith.mulf %421, %400 : vector<8x128xf32>
    %423 = vector.broadcast %253 : f32 to vector<8x128xf32>
    %424 = arith.mulf %423, %211 : vector<8x128xf32>
    %425 = arith.addf %422, %424 : vector<8x128xf32>
    %426 = vector.broadcast %254 : f32 to vector<8x128xf32>
    %427 = arith.mulf %426, %402 : vector<8x128xf32>
    %428 = arith.addf %425, %427 : vector<8x128xf32>
    %429 = arith.addf %380, %428 : vector<8x128xf32>
    %430 = vector.broadcast %267 : f32 to vector<8x128xf32>
    %431 = arith.mulf %430, %400 : vector<8x128xf32>
    %432 = vector.broadcast %268 : f32 to vector<8x128xf32>
    %433 = arith.mulf %432, %211 : vector<8x128xf32>
    %434 = arith.addf %431, %433 : vector<8x128xf32>
    %435 = vector.broadcast %269 : f32 to vector<8x128xf32>
    %436 = arith.mulf %435, %402 : vector<8x128xf32>
    %437 = arith.addf %434, %436 : vector<8x128xf32>
    %438 = arith.addf %389, %437 : vector<8x128xf32>
    %439 = vector.broadcast %282 : f32 to vector<8x128xf32>
    %440 = arith.mulf %439, %400 : vector<8x128xf32>
    %441 = vector.broadcast %283 : f32 to vector<8x128xf32>
    %442 = arith.mulf %441, %211 : vector<8x128xf32>
    %443 = arith.addf %440, %442 : vector<8x128xf32>
    %444 = vector.broadcast %284 : f32 to vector<8x128xf32>
    %445 = arith.mulf %444, %402 : vector<8x128xf32>
    %446 = arith.addf %443, %445 : vector<8x128xf32>
    %447 = arith.addf %398, %446 : vector<8x128xf32>
    %448 = vector.extract_strided_slice %213 {offsets = [0, 0], sizes = [8, 127], strides = [1, 1]} : vector<8x128xf32> to vector<8x127xf32>
    %449 = tpu.concatenate %3, %448 in 1 : vector<8x1xf32>, vector<8x127xf32> -> vector<8x128xf32>
    %450 = vector.extract_strided_slice %213 {offsets = [0, 1], sizes = [8, 127], strides = [1, 1]} : vector<8x128xf32> to vector<8x127xf32>
    %451 = tpu.concatenate %450, %3 in 1 : vector<8x127xf32>, vector<8x1xf32> -> vector<8x128xf32>
    %452 = vector.broadcast %225 : f32 to vector<8x128xf32>
    %453 = arith.mulf %452, %449 : vector<8x128xf32>
    %454 = vector.broadcast %226 : f32 to vector<8x128xf32>
    %455 = arith.mulf %454, %213 : vector<8x128xf32>
    %456 = arith.addf %453, %455 : vector<8x128xf32>
    %457 = vector.broadcast %227 : f32 to vector<8x128xf32>
    %458 = arith.mulf %457, %451 : vector<8x128xf32>
    %459 = arith.addf %456, %458 : vector<8x128xf32>
    %460 = arith.addf %411, %459 : vector<8x128xf32>
    %461 = vector.broadcast %240 : f32 to vector<8x128xf32>
    %462 = arith.mulf %461, %449 : vector<8x128xf32>
    %463 = vector.broadcast %241 : f32 to vector<8x128xf32>
    %464 = arith.mulf %463, %213 : vector<8x128xf32>
    %465 = arith.addf %462, %464 : vector<8x128xf32>
    %466 = vector.broadcast %242 : f32 to vector<8x128xf32>
    %467 = arith.mulf %466, %451 : vector<8x128xf32>
    %468 = arith.addf %465, %467 : vector<8x128xf32>
    %469 = arith.addf %420, %468 : vector<8x128xf32>
    %470 = vector.broadcast %255 : f32 to vector<8x128xf32>
    %471 = arith.mulf %470, %449 : vector<8x128xf32>
    %472 = vector.broadcast %256 : f32 to vector<8x128xf32>
    %473 = arith.mulf %472, %213 : vector<8x128xf32>
    %474 = arith.addf %471, %473 : vector<8x128xf32>
    %475 = vector.broadcast %257 : f32 to vector<8x128xf32>
    %476 = arith.mulf %475, %451 : vector<8x128xf32>
    %477 = arith.addf %474, %476 : vector<8x128xf32>
    %478 = arith.addf %429, %477 : vector<8x128xf32>
    %479 = vector.broadcast %270 : f32 to vector<8x128xf32>
    %480 = arith.mulf %479, %449 : vector<8x128xf32>
    %481 = vector.broadcast %271 : f32 to vector<8x128xf32>
    %482 = arith.mulf %481, %213 : vector<8x128xf32>
    %483 = arith.addf %480, %482 : vector<8x128xf32>
    %484 = vector.broadcast %272 : f32 to vector<8x128xf32>
    %485 = arith.mulf %484, %451 : vector<8x128xf32>
    %486 = arith.addf %483, %485 : vector<8x128xf32>
    %487 = arith.addf %438, %486 : vector<8x128xf32>
    %488 = vector.broadcast %285 : f32 to vector<8x128xf32>
    %489 = arith.mulf %488, %449 : vector<8x128xf32>
    %490 = vector.broadcast %286 : f32 to vector<8x128xf32>
    %491 = arith.mulf %490, %213 : vector<8x128xf32>
    %492 = arith.addf %489, %491 : vector<8x128xf32>
    %493 = vector.broadcast %287 : f32 to vector<8x128xf32>
    %494 = arith.mulf %493, %451 : vector<8x128xf32>
    %495 = arith.addf %492, %494 : vector<8x128xf32>
    %496 = arith.addf %447, %495 : vector<8x128xf32>
    %497 = vector.extract_strided_slice %215 {offsets = [0, 0], sizes = [8, 127], strides = [1, 1]} : vector<8x128xf32> to vector<8x127xf32>
    %498 = tpu.concatenate %3, %497 in 1 : vector<8x1xf32>, vector<8x127xf32> -> vector<8x128xf32>
    %499 = vector.extract_strided_slice %215 {offsets = [0, 1], sizes = [8, 127], strides = [1, 1]} : vector<8x128xf32> to vector<8x127xf32>
    %500 = tpu.concatenate %499, %3 in 1 : vector<8x127xf32>, vector<8x1xf32> -> vector<8x128xf32>
    %501 = vector.broadcast %228 : f32 to vector<8x128xf32>
    %502 = arith.mulf %501, %498 : vector<8x128xf32>
    %503 = vector.broadcast %229 : f32 to vector<8x128xf32>
    %504 = arith.mulf %503, %215 : vector<8x128xf32>
    %505 = arith.addf %502, %504 : vector<8x128xf32>
    %506 = vector.broadcast %230 : f32 to vector<8x128xf32>
    %507 = arith.mulf %506, %500 : vector<8x128xf32>
    %508 = arith.addf %505, %507 : vector<8x128xf32>
    %509 = arith.addf %460, %508 : vector<8x128xf32>
    %510 = vector.broadcast %243 : f32 to vector<8x128xf32>
    %511 = arith.mulf %510, %498 : vector<8x128xf32>
    %512 = vector.broadcast %244 : f32 to vector<8x128xf32>
    %513 = arith.mulf %512, %215 : vector<8x128xf32>
    %514 = arith.addf %511, %513 : vector<8x128xf32>
    %515 = vector.broadcast %245 : f32 to vector<8x128xf32>
    %516 = arith.mulf %515, %500 : vector<8x128xf32>
    %517 = arith.addf %514, %516 : vector<8x128xf32>
    %518 = arith.addf %469, %517 : vector<8x128xf32>
    %519 = vector.broadcast %258 : f32 to vector<8x128xf32>
    %520 = arith.mulf %519, %498 : vector<8x128xf32>
    %521 = vector.broadcast %259 : f32 to vector<8x128xf32>
    %522 = arith.mulf %521, %215 : vector<8x128xf32>
    %523 = arith.addf %520, %522 : vector<8x128xf32>
    %524 = vector.broadcast %260 : f32 to vector<8x128xf32>
    %525 = arith.mulf %524, %500 : vector<8x128xf32>
    %526 = arith.addf %523, %525 : vector<8x128xf32>
    %527 = arith.addf %478, %526 : vector<8x128xf32>
    %528 = vector.broadcast %273 : f32 to vector<8x128xf32>
    %529 = arith.mulf %528, %498 : vector<8x128xf32>
    %530 = vector.broadcast %274 : f32 to vector<8x128xf32>
    %531 = arith.mulf %530, %215 : vector<8x128xf32>
    %532 = arith.addf %529, %531 : vector<8x128xf32>
    %533 = vector.broadcast %275 : f32 to vector<8x128xf32>
    %534 = arith.mulf %533, %500 : vector<8x128xf32>
    %535 = arith.addf %532, %534 : vector<8x128xf32>
    %536 = arith.addf %487, %535 : vector<8x128xf32>
    %537 = vector.broadcast %288 : f32 to vector<8x128xf32>
    %538 = arith.mulf %537, %498 : vector<8x128xf32>
    %539 = vector.broadcast %289 : f32 to vector<8x128xf32>
    %540 = arith.mulf %539, %215 : vector<8x128xf32>
    %541 = arith.addf %538, %540 : vector<8x128xf32>
    %542 = vector.broadcast %290 : f32 to vector<8x128xf32>
    %543 = arith.mulf %542, %500 : vector<8x128xf32>
    %544 = arith.addf %541, %543 : vector<8x128xf32>
    %545 = arith.addf %496, %544 : vector<8x128xf32>
    %cst_66 = arith.constant 0.000000e+00 : f32
    %546 = vector.broadcast %cst_66 : f32 to vector<8x128xf32>
    %547 = arith.maximumf %509, %546 : vector<8x128xf32>
    %cst_67 = arith.constant 0.000000e+00 : f32
    %548 = vector.broadcast %cst_67 : f32 to vector<8x128xf32>
    %549 = arith.maximumf %518, %548 : vector<8x128xf32>
    %cst_68 = arith.constant 0.000000e+00 : f32
    %550 = vector.broadcast %cst_68 : f32 to vector<8x128xf32>
    %551 = arith.maximumf %527, %550 : vector<8x128xf32>
    %cst_69 = arith.constant 0.000000e+00 : f32
    %552 = vector.broadcast %cst_69 : f32 to vector<8x128xf32>
    %553 = arith.maximumf %536, %552 : vector<8x128xf32>
    %cst_70 = arith.constant 0.000000e+00 : f32
    %554 = vector.broadcast %cst_70 : f32 to vector<8x128xf32>
    %555 = arith.maximumf %545, %554 : vector<8x128xf32>
    %c0_71 = arith.constant 0 : index
    %556 = memref.load %arg8[%c0_71] : memref<15xf32, #tpu.memory_space<smem>>
    %c1_72 = arith.constant 1 : index
    %557 = memref.load %arg8[%c1_72] : memref<15xf32, #tpu.memory_space<smem>>
    %c2_73 = arith.constant 2 : index
    %558 = memref.load %arg8[%c2_73] : memref<15xf32, #tpu.memory_space<smem>>
    %c3_74 = arith.constant 3 : index
    %559 = memref.load %arg8[%c3_74] : memref<15xf32, #tpu.memory_space<smem>>
    %c4_75 = arith.constant 4 : index
    %560 = memref.load %arg8[%c4_75] : memref<15xf32, #tpu.memory_space<smem>>
    %c5_76 = arith.constant 5 : index
    %561 = memref.load %arg8[%c5_76] : memref<15xf32, #tpu.memory_space<smem>>
    %c6_77 = arith.constant 6 : index
    %562 = memref.load %arg8[%c6_77] : memref<15xf32, #tpu.memory_space<smem>>
    %c7_78 = arith.constant 7 : index
    %563 = memref.load %arg8[%c7_78] : memref<15xf32, #tpu.memory_space<smem>>
    %c8_79 = arith.constant 8 : index
    %564 = memref.load %arg8[%c8_79] : memref<15xf32, #tpu.memory_space<smem>>
    %c9_80 = arith.constant 9 : index
    %565 = memref.load %arg8[%c9_80] : memref<15xf32, #tpu.memory_space<smem>>
    %c10_81 = arith.constant 10 : index
    %566 = memref.load %arg8[%c10_81] : memref<15xf32, #tpu.memory_space<smem>>
    %c11_82 = arith.constant 11 : index
    %567 = memref.load %arg8[%c11_82] : memref<15xf32, #tpu.memory_space<smem>>
    %c12_83 = arith.constant 12 : index
    %568 = memref.load %arg8[%c12_83] : memref<15xf32, #tpu.memory_space<smem>>
    %c13_84 = arith.constant 13 : index
    %569 = memref.load %arg8[%c13_84] : memref<15xf32, #tpu.memory_space<smem>>
    %c14_85 = arith.constant 14 : index
    %570 = memref.load %arg8[%c14_85] : memref<15xf32, #tpu.memory_space<smem>>
    %c0_86 = arith.constant 0 : index
    %571 = memref.load %arg9[%c0_86] : memref<1xf32, #tpu.memory_space<smem>>
    %572 = vector.broadcast %556 : f32 to vector<8x128xf32>
    %573 = arith.mulf %572, %547 : vector<8x128xf32>
    %574 = vector.broadcast %557 : f32 to vector<8x128xf32>
    %575 = arith.mulf %574, %547 : vector<8x128xf32>
    %576 = vector.broadcast %558 : f32 to vector<8x128xf32>
    %577 = arith.mulf %576, %547 : vector<8x128xf32>
    %578 = vector.broadcast %559 : f32 to vector<8x128xf32>
    %579 = arith.mulf %578, %549 : vector<8x128xf32>
    %580 = arith.addf %573, %579 : vector<8x128xf32>
    %581 = vector.broadcast %560 : f32 to vector<8x128xf32>
    %582 = arith.mulf %581, %549 : vector<8x128xf32>
    %583 = arith.addf %575, %582 : vector<8x128xf32>
    %584 = vector.broadcast %561 : f32 to vector<8x128xf32>
    %585 = arith.mulf %584, %549 : vector<8x128xf32>
    %586 = arith.addf %577, %585 : vector<8x128xf32>
    %587 = vector.broadcast %562 : f32 to vector<8x128xf32>
    %588 = arith.mulf %587, %551 : vector<8x128xf32>
    %589 = arith.addf %580, %588 : vector<8x128xf32>
    %590 = vector.broadcast %563 : f32 to vector<8x128xf32>
    %591 = arith.mulf %590, %551 : vector<8x128xf32>
    %592 = arith.addf %583, %591 : vector<8x128xf32>
    %593 = vector.broadcast %564 : f32 to vector<8x128xf32>
    %594 = arith.mulf %593, %551 : vector<8x128xf32>
    %595 = arith.addf %586, %594 : vector<8x128xf32>
    %596 = vector.broadcast %565 : f32 to vector<8x128xf32>
    %597 = arith.mulf %596, %553 : vector<8x128xf32>
    %598 = arith.addf %589, %597 : vector<8x128xf32>
    %599 = vector.broadcast %566 : f32 to vector<8x128xf32>
    %600 = arith.mulf %599, %553 : vector<8x128xf32>
    %601 = arith.addf %592, %600 : vector<8x128xf32>
    %602 = vector.broadcast %567 : f32 to vector<8x128xf32>
    %603 = arith.mulf %602, %553 : vector<8x128xf32>
    %604 = arith.addf %595, %603 : vector<8x128xf32>
    %605 = vector.broadcast %568 : f32 to vector<8x128xf32>
    %606 = arith.mulf %605, %555 : vector<8x128xf32>
    %607 = arith.addf %598, %606 : vector<8x128xf32>
    %608 = vector.broadcast %569 : f32 to vector<8x128xf32>
    %609 = arith.mulf %608, %555 : vector<8x128xf32>
    %610 = arith.addf %601, %609 : vector<8x128xf32>
    %611 = vector.broadcast %570 : f32 to vector<8x128xf32>
    %612 = arith.mulf %611, %555 : vector<8x128xf32>
    %613 = arith.addf %604, %612 : vector<8x128xf32>
    %614 = vector.extract_strided_slice %607 {offsets = [0, 0], sizes = [8, 127], strides = [1, 1]} : vector<8x128xf32> to vector<8x127xf32>
    %615 = tpu.concatenate %3, %614 in 1 : vector<8x1xf32>, vector<8x127xf32> -> vector<8x128xf32>
    %616 = arith.addf %615, %610 : vector<8x128xf32>
    %617 = vector.extract_strided_slice %613 {offsets = [0, 1], sizes = [8, 127], strides = [1, 1]} : vector<8x128xf32> to vector<8x127xf32>
    %618 = tpu.concatenate %617, %3 in 1 : vector<8x127xf32>, vector<8x1xf32> -> vector<8x128xf32>
    %619 = arith.addf %616, %618 : vector<8x128xf32>
    %620 = vector.broadcast %571 : f32 to vector<8x128xf32>
    %621 = arith.addf %619, %620 : vector<8x128xf32>
    %622 = arith.addf %621, %0 : vector<8x128xf32>
    %c0_87 = arith.constant 0 : index
    %c0_88 = arith.constant 0 : index
    %623 = vector.load %arg10[%c0_87, %c0_88] : memref<8x128xf32, #tpu.memory_space<vmem>>, vector<8x128xf32>
    tpu.vector_store %arg10[%c0_87, %c0_88], %622 {strides = array<i32>} : memref<8x128xf32, #tpu.memory_space<vmem>>, vector<8x128xf32>,
    return
  }
  func.func @transform_0(%arg0: i32) -> (i32, i32) {
    %c0_i32 = arith.constant 0 : i32
    %c0_i32_0 = arith.constant 0 : i32
    return %arg0, %c0_i32 : i32, i32
  }
  func.func @transform_1(%arg0: i32) -> (i32, i32) {
    %c0_i32 = arith.constant 0 : i32
    %c0_i32_0 = arith.constant 0 : i32
    return %arg0, %c0_i32 : i32, i32
  }
  func.func @transform_2(%arg0: i32) -> (i32, i32) {
    %c0_i32 = arith.constant 0 : i32
    %c0_i32_0 = arith.constant 0 : i32
    return %arg0, %c0_i32 : i32, i32
  }
  func.func @transform_3(%arg0: i32) -> i32 {
    %c0_i32 = arith.constant 0 : i32
    %c0_i32_0 = arith.constant 0 : i32
    return %c0_i32 : i32
  }
  func.func @transform_4(%arg0: i32) -> i32 {
    %c0_i32 = arith.constant 0 : i32
    %c0_i32_0 = arith.constant 0 : i32
    return %c0_i32 : i32
  }
  func.func @transform_5(%arg0: i32) -> i32 {
    %c0_i32 = arith.constant 0 : i32
    %c0_i32_0 = arith.constant 0 : i32
    return %c0_i32 : i32
  }
  func.func @transform_6(%arg0: i32) -> i32 {
    %c0_i32 = arith.constant 0 : i32
    %c0_i32_0 = arith.constant 0 : i32
    return %c0_i32 : i32
  }
  func.func @transform_7(%arg0: i32) -> i32 {
    %c0_i32 = arith.constant 0 : i32
    %c0_i32_0 = arith.constant 0 : i32
    return %c0_i32 : i32
  }
  func.func @transform_8(%arg0: i32) -> i32 {
    %c0_i32 = arith.constant 0 : i32
    %c0_i32_0 = arith.constant 0 : i32
    return %c0_i32 : i32
  }
  func.func @transform_9(%arg0: i32) -> (i32, i32) {
    %c0_i32 = arith.constant 0 : i32
    %c0_i32_0 = arith.constant 0 : i32
    return %arg0, %c0_i32 : i32, i32
  }
}

</mosaic_0001>

<llo_original>
// kernel: tpu_custom_call.1
$region0: #{tpu_custom_call.1}
  #allocation0 [shape = 'u32[]', space=smem, size = 0x4, offset = 0x4, fixed_abs, tag = 'smem constant byte address 0x4 - core index']
  #allocation1 [shape = 'u32[144,128]{1,0:T(1,128)}', space=vmem, size = 0x12000, scoped, tag = 'internal scratch']
  #allocation2 [shape = 'f32[1]{0:T(128)S(6)}', space=smem, size = 0x200, scoped, tag = 'scoped memory for tpu_custom_call.1']
  %s0 = inlined_call_operand.hbm [shape: f32[8,128], index: 0, kind: input, shape index: {}]
  %s1 = inlined_call_operand.hbm [shape: f32[8,128], index: 1, kind: input, shape index: {}]
  %s2 = inlined_call_operand.hbm [shape: f32[8,128], index: 2, kind: input, shape index: {}]
  %s3 = inlined_call_operand.vmem [shape: f32[45], index: 3, kind: input, shape index: {}]
  %s4 = inlined_call_operand.vmem [shape: f32[5], index: 4, kind: input, shape index: {}]
  %s5 = inlined_call_operand.vmem [shape: f32[75], index: 5, kind: input, shape index: {}]
  %s6 = inlined_call_operand.vmem [shape: f32[5], index: 6, kind: input, shape index: {}]
  %s7 = inlined_call_operand.vmem [shape: f32[15], index: 7, kind: input, shape index: {}]
  %s8 = inlined_call_operand.<no memory space> [shape: f32[1], index: 8, kind: input, shape index: {}]
  %s9 = inlined_call_operand.hbm [shape: f32[8,128], index: 9, kind: output, shape index: {}]
  %s10 = sld [smem:[#allocation0]]
  $region78: #{tpu_custom_call.1} parent=0
    _
  %s12 = ssub.s32 1, %s10
  %s13 = scalar_select 0, %s12, %s10
  %14 = sst [smem:[#allocation2]] %s8
  $region1: #{tpu_custom_call.1} parent=0
    #allocation3 [shape = 'u8[4096]{0}', space=vmem, size = 0x1000, scoped, tag = 'input window, operand 0, single buffered']
    #allocation4 [shape = 's32[1]{0}', space=sflag, size = 0x4, scoped, tag = 'scoped memory for tpu_custom_call.1']
    #allocation5 [shape = 's32[1]{0}', space=sflag, size = 0x4, scoped, tag = 'scoped memory for tpu_custom_call.1']
    #allocation6 [shape = 's32[1]{0}', space=sflag, size = 0x4, scoped, tag = 'scoped memory for tpu_custom_call.1']
    #allocation7 [shape = 'u8[4096]{0}', space=vmem, size = 0x1000, scoped, tag = 'input window, operand 1, single buffered']
    #allocation8 [shape = 's32[1]{0}', space=sflag, size = 0x4, scoped, tag = 'scoped memory for tpu_custom_call.1']
    #allocation9 [shape = 'u8[4096]{0}', space=vmem, size = 0x1000, scoped, tag = 'input window, operand 2, single buffered']
    #allocation10 [shape = 'u8[512]{0}', space=smem, size = 0x200, scoped, tag = 'input window, operand 3, single buffered']
    #allocation11 [shape = 'u8[512]{0}', space=smem, size = 0x200, scoped, tag = 'input window, operand 4, single buffered']
    #allocation12 [shape = 's32[1]{0}', space=sflag, size = 0x4, scoped, tag = 'scoped memory for tpu_custom_call.1']
    #allocation13 [shape = 'u8[512]{0}', space=smem, size = 0x200, scoped, tag = 'input window, operand 5, single buffered']
    #allocation14 [shape = 'u8[512]{0}', space=smem, size = 0x200, scoped, tag = 'input window, operand 6, single buffered']
    #allocation15 [shape = 's32[1]{0}', space=sflag, size = 0x4, scoped, tag = 'scoped memory for tpu_custom_call.1']
    #allocation16 [shape = 'u8[512]{0}', space=smem, size = 0x200, scoped, tag = 'input window, operand 7, single buffered']
    #allocation17 [shape = 'u8[4096]{0}', space=vmem, size = 0x1000, scoped, tag = 'output window, operand 0, single buffered']
    %15 = vsyncpa [#allocation4], 0
    %16 = vsyncpa [#allocation8], 0
    %17 = vsyncpa [#allocation6], 0
    %18 = vsyncpa [#allocation12], 0
    %19 = vsyncpa [#allocation15], 0
    %20 = vsyncpa [#allocation5], 0
    // Predicated region
    $region2: #{tpu_custom_call.1} parent=1 // pred_check
      _
    $region3: #{tpu_custom_call.1} parent=1 // pred_check_branch
      %22 = sbr.rel (0) target = $region5
    $region4: #{tpu_custom_call.1} parent=1 // pred_region
      %s24 = ssub.s32 128, 128
      %25 = vsyncadd [#allocation4], %s24
      %s27 = sshll.u32 [#allocation3], 4
      %s28 = int_to_ptr.vmem [resolvable:$true] %s27
      %30 = dma.hbm_to_vmem [thread:$0]  %s0, 128, %s28, [#allocation4]
    $region5: #{tpu_custom_call.1} parent=1 // pred_fallthru
      _
    // Predicated region
    $region6: #{tpu_custom_call.1} parent=1 // pred_check
      _
    $region7: #{tpu_custom_call.1} parent=1 // pred_check_branch
      %32 = sbr.rel (0) target = $region9
    $region8: #{tpu_custom_call.1} parent=1 // pred_region
      %s34 = ssub.s32 128, 128
      %35 = vsyncadd [#allocation8], %s34
      %s37 = sshll.u32 [#allocation7], 4
      %s38 = int_to_ptr.vmem [resolvable:$true] %s37
      %40 = dma.hbm_to_vmem [thread:$0]  %s1, 128, %s38, [#allocation8]
    $region9: #{tpu_custom_call.1} parent=1 // pred_fallthru
      _
    // Predicated region
    $region10: #{tpu_custom_call.1} parent=1 // pred_check
      _
    $region11: #{tpu_custom_call.1} parent=1 // pred_check_branch
      %42 = sbr.rel (0) target = $region13
    $region12: #{tpu_custom_call.1} parent=1 // pred_region
      %s44 = ssub.s32 128, 128
      %45 = vsyncadd [#allocation8], %s44
      %s47 = sshll.u32 [#allocation9], 4
      %s48 = int_to_ptr.vmem [resolvable:$true] %s47
      %50 = dma.hbm_to_vmem [thread:$0]  %s2, 128, %s48, [#allocation8]
    $region13: #{tpu_custom_call.1} parent=1 // pred_fallthru
      _
    // Predicated region
    $region14: #{tpu_custom_call.1} parent=1 // pred_check
      _
    $region15: #{tpu_custom_call.1} parent=1 // pred_check_branch
      %52 = sbr.rel (0) target = $region17
    $region16: #{tpu_custom_call.1} parent=1 // pred_region
      %s54 = ssub.s32 16, 16
      %55 = vsyncadd [#allocation6], %s54
      %s57 = sshll.u32 %s3, 4
      %s58 = int_to_ptr.vmem [resolvable:$true] %s57
      %60 = dma.vmem_to_smem %s58, 16, [#allocation10], [#allocation6]
    $region17: #{tpu_custom_call.1} parent=1 // pred_fallthru
      _
    // Predicated region
    $region18: #{tpu_custom_call.1} parent=1 // pred_check
      _
    $region19: #{tpu_custom_call.1} parent=1 // pred_check_branch
      %62 = sbr.rel (0) target = $region21
    $region20: #{tpu_custom_call.1} parent=1 // pred_region
      %s64 = ssub.s32 16, 16
      %65 = vsyncadd [#allocation12], %s64
      %s67 = sshll.u32 %s4, 4
      %s68 = int_to_ptr.vmem [resolvable:$true] %s67
      %70 = dma.vmem_to_smem %s68, 16, [#allocation11], [#allocation12]
    $region21: #{tpu_custom_call.1} parent=1 // pred_fallthru
      _
    // Predicated region
    $region22: #{tpu_custom_call.1} parent=1 // pred_check
      _
    $region23: #{tpu_custom_call.1} parent=1 // pred_check_branch
      %72 = sbr.rel (0) target = $region25
    $region24: #{tpu_custom_call.1} parent=1 // pred_region
      %s74 = ssub.s32 16, 16
      %75 = vsyncadd [#allocation12], %s74
      %s77 = sshll.u32 %s5, 4
      %s78 = int_to_ptr.vmem [resolvable:$true] %s77
      %80 = dma.vmem_to_smem %s78, 16, [#allocation13], [#allocation12]
    $region25: #{tpu_custom_call.1} parent=1 // pred_fallthru
      _
    // Predicated region
    $region26: #{tpu_custom_call.1} parent=1 // pred_check
      _
    $region27: #{tpu_custom_call.1} parent=1 // pred_check_branch
      %82 = sbr.rel (0) target = $region29
    $region28: #{tpu_custom_call.1} parent=1 // pred_region
      %s84 = ssub.s32 16, 16
      %85 = vsyncadd [#allocation15], %s84
      %s87 = sshll.u32 %s6, 4
      %s88 = int_to_ptr.vmem [resolvable:$true] %s87
      %90 = dma.vmem_to_smem %s88, 16, [#allocation14], [#allocation15]
    $region29: #{tpu_custom_call.1} parent=1 // pred_fallthru
      _
    // Predicated region
    $region30: #{tpu_custom_call.1} parent=1 // pred_check
      _
    $region31: #{tpu_custom_call.1} parent=1 // pred_check_branch
      %92 = sbr.rel (0) target = $region33
    $region32: #{tpu_custom_call.1} parent=1 // pred_region
      %s94 = ssub.s32 16, 16
      %95 = vsyncadd [#allocation15], %s94
      %s97 = sshll.u32 %s7, 4
      %s98 = int_to_ptr.vmem [resolvable:$true] %s97
      %100 = dma.vmem_to_smem %s98, 16, [#allocation16], [#allocation15]
    $region33: #{tpu_custom_call.1} parent=1 // pred_fallthru
      _
    // Predicated region
    $region34: #{tpu_custom_call.1} parent=1 // pred_check
      _
    $region35: #{tpu_custom_call.1} parent=1 // pred_check_branch
      %102 = sbr.rel (0) target = $region37
    $region36: #{tpu_custom_call.1} parent=1 // pred_region
      _
    $region37: #{tpu_custom_call.1} parent=1 // pred_fallthru
      _
    // Predicated region
    $region38: #{tpu_custom_call.1} parent=1 // pred_check
      _
    $region39: #{tpu_custom_call.1} parent=1 // pred_check_branch
      %104 = sbr.rel (0) target = $region41
    $region40: #{tpu_custom_call.1} parent=1 // pred_region
      %105 = dma.done [#allocation4], 128
    $region41: #{tpu_custom_call.1} parent=1 // pred_fallthru
      _
    // Predicated region
    $region42: #{tpu_custom_call.1} parent=1 // pred_check
      _
    $region43: #{tpu_custom_call.1} parent=1 // pred_check_branch
      %107 = sbr.rel (0) target = $region45
    $region44: #{tpu_custom_call.1} parent=1 // pred_region
      %108 = dma.done [#allocation8], 128
    $region45: #{tpu_custom_call.1} parent=1 // pred_fallthru
      _
    // Predicated region
    $region46: #{tpu_custom_call.1} parent=1 // pred_check
      _
    $region47: #{tpu_custom_call.1} parent=1 // pred_check_branch
      %110 = sbr.rel (0) target = $region49
    $region48: #{tpu_custom_call.1} parent=1 // pred_region
      %111 = dma.done [#allocation8], 128
    $region49: #{tpu_custom_call.1} parent=1 // pred_fallthru
      _
    // Predicated region
    $region50: #{tpu_custom_call.1} parent=1 // pred_check
      _
    $region51: #{tpu_custom_call.1} parent=1 // pred_check_branch
      %113 = sbr.rel (0) target = $region53
    $region52: #{tpu_custom_call.1} parent=1 // pred_region
      %114 = dma.done [#allocation6], 16
    $region53: #{tpu_custom_call.1} parent=1 // pred_fallthru
      _
    // Predicated region
    $region54: #{tpu_custom_call.1} parent=1 // pred_check
      _
    $region55: #{tpu_custom_call.1} parent=1 // pred_check_branch
      %116 = sbr.rel (0) target = $region57
    $region56: #{tpu_custom_call.1} parent=1 // pred_region
      %117 = dma.done [#allocation12], 16
    $region57: #{tpu_custom_call.1} parent=1 // pred_fallthru
      _
    // Predicated region
    $region58: #{tpu_custom_call.1} parent=1 // pred_check
      _
    $region59: #{tpu_custom_call.1} parent=1 // pred_check_branch
      %119 = sbr.rel (0) target = $region61
    $region60: #{tpu_custom_call.1} parent=1 // pred_region
      %120 = dma.done [#allocation12], 16
    $region61: #{tpu_custom_call.1} parent=1 // pred_fallthru
      _
    // Predicated region
    $region62: #{tpu_custom_call.1} parent=1 // pred_check
      _
    $region63: #{tpu_custom_call.1} parent=1 // pred_check_branch
      %122 = sbr.rel (0) target = $region65
    $region64: #{tpu_custom_call.1} parent=1 // pred_region
      %123 = dma.done [#allocation15], 16
    $region65: #{tpu_custom_call.1} parent=1 // pred_fallthru
      _
    // Predicated region
    $region66: #{tpu_custom_call.1} parent=1 // pred_check
      _
    $region67: #{tpu_custom_call.1} parent=1 // pred_check_branch
      %125 = sbr.rel (0) target = $region69
    $region68: #{tpu_custom_call.1} parent=1 // pred_region
      %126 = dma.done [#allocation15], 16
    $region69: #{tpu_custom_call.1} parent=1 // pred_fallthru
      _
    %127 = sfence
    %v128 = vld [vmem:[#allocation3] sm:$0xff]
    %v129 = vld [vmem:[#allocation7] sm:$0xff]
    %v130 = vld [vmem:[#allocation9] sm:$0xff]
    %s131 = sld [smem:[#allocation10]]
    %s132 = sld [smem:[#allocation10 + $0x1]]
    %s133 = sld [smem:[#allocation10 + $0x2]]
    %s134 = sld [smem:[#allocation10 + $0x3]]
    %s135 = sld [smem:[#allocation10 + $0x4]]
    %s136 = sld [smem:[#allocation10 + $0x5]]
    %s137 = sld [smem:[#allocation10 + $0x6]]
    %s138 = sld [smem:[#allocation10 + $0x7]]
    %s139 = sld [smem:[#allocation10 + $0x8]]
    %s140 = sld [smem:[#allocation10 + $0x9]]
    %s141 = sld [smem:[#allocation10 + $0xa]]
    %s142 = sld [smem:[#allocation10 + $0xb]]
    %s143 = sld [smem:[#allocation10 + $0xc]]
    %s144 = sld [smem:[#allocation10 + $0xd]]
    %s145 = sld [smem:[#allocation10 + $0xe]]
    %s146 = sld [smem:[#allocation10 + $0xf]]
    %s147 = sld [smem:[#allocation10 + $0x10]]
    %s148 = sld [smem:[#allocation10 + $0x11]]
    %s149 = sld [smem:[#allocation10 + $0x12]]
    %s150 = sld [smem:[#allocation10 + $0x13]]
    %s151 = sld [smem:[#allocation10 + $0x14]]
    %s152 = sld [smem:[#allocation10 + $0x15]]
    %s153 = sld [smem:[#allocation10 + $0x16]]
    %s154 = sld [smem:[#allocation10 + $0x17]]
    %s155 = sld [smem:[#allocation10 + $0x18]]
    %s156 = sld [smem:[#allocation10 + $0x19]]
    %s157 = sld [smem:[#allocation10 + $0x1a]]
    %s158 = sld [smem:[#allocation10 + $0x1b]]
    %s159 = sld [smem:[#allocation10 + $0x1c]]
    %s160 = sld [smem:[#allocation10 + $0x1d]]
    %s161 = sld [smem:[#allocation10 + $0x1e]]
    %s162 = sld [smem:[#allocation10 + $0x1f]]
    %s163 = sld [smem:[#allocation10 + $0x20]]
    %s164 = sld [smem:[#allocation10 + $0x21]]
    %s165 = sld [smem:[#allocation10 + $0x22]]
    %s166 = sld [smem:[#allocation10 + $0x23]]
    %s167 = sld [smem:[#allocation10 + $0x24]]
    %s168 = sld [smem:[#allocation10 + $0x25]]
    %s169 = sld [smem:[#allocation10 + $0x26]]
    %s170 = sld [smem:[#allocation10 + $0x27]]
    %s171 = sld [smem:[#allocation10 + $0x28]]
    %s172 = sld [smem:[#allocation10 + $0x29]]
    %s173 = sld [smem:[#allocation10 + $0x2a]]
    %s174 = sld [smem:[#allocation10 + $0x2b]]
    %s175 = sld [smem:[#allocation10 + $0x2c]]
    %s176 = sld [smem:[#allocation11]]
    %s177 = sld [smem:[#allocation11 + $0x1]]
    %s178 = sld [smem:[#allocation11 + $0x2]]
    %s179 = sld [smem:[#allocation11 + $0x3]]
    %s180 = sld [smem:[#allocation11 + $0x4]]
    %182 = vrot.lane.b32.xlu0 %v128, 1
    %v183 = vpop.permute.xlu0 %182
    %vm185 = vcmask 7168
    %v186 = vsel %vm185, 0.0, %v183
    %187 = vrot.lane.b32.xlu0 %v128, 127
    %v188 = vpop.permute.xlu0 %187
    %vm190 = vcmask 1039360
    %v191 = vsel %vm190, %v188, 0.0
    %v192 = vstv %s131
    %v193 = vmul.f32 %v192, %v186
    %v194 = vstv %s132
    %v195 = vmul.f32 %v194, %v128
    %v196 = vadd.f32 %v193, %v195
    %v197 = vstv %s133
    %v198 = vmul.f32 %v197, %v191
    %v199 = vadd.f32 %v196, %v198
    %v200 = vstv %s176
    %v201 = vadd.f32 %v199, %v200
    %v202 = vstv %s140
    %v203 = vmul.f32 %v202, %v186
    %v204 = vstv %s141
    %v205 = vmul.f32 %v204, %v128
    %v206 = vadd.f32 %v203, %v205
    %v207 = vstv %s142
    %v208 = vmul.f32 %v207, %v191
    %v209 = vadd.f32 %v206, %v208
    %v210 = vstv %s177
    %v211 = vadd.f32 %v209, %v210
    %v212 = vstv %s149
    %v213 = vmul.f32 %v212, %v186
    %v214 = vstv %s150
    %v215 = vmul.f32 %v214, %v128
    %v216 = vadd.f32 %v213, %v215
    %v217 = vstv %s151
    %v218 = vmul.f32 %v217, %v191
    %v219 = vadd.f32 %v216, %v218
    %v220 = vstv %s178
    %v221 = vadd.f32 %v219, %v220
    %v222 = vstv %s158
    %v223 = vmul.f32 %v222, %v186
    %v224 = vstv %s159
    %v225 = vmul.f32 %v224, %v128
    %v226 = vadd.f32 %v223, %v225
    %v227 = vstv %s160
    %v228 = vmul.f32 %v227, %v191
    %v229 = vadd.f32 %v226, %v228
    %v230 = vstv %s179
    %v231 = vadd.f32 %v229, %v230
    %v232 = vstv %s167
    %v233 = vmul.f32 %v232, %v186
    %v234 = vstv %s168
    %v235 = vmul.f32 %v234, %v128
    %v236 = vadd.f32 %v233, %v235
    %v237 = vstv %s169
    %v238 = vmul.f32 %v237, %v191
    %v239 = vadd.f32 %v236, %v238
    %v240 = vstv %s180
    %v241 = vadd.f32 %v239, %v240
    %243 = vrot.lane.b32.xlu0 %v129, 1
    %v244 = vpop.permute.xlu0 %243
    %v246 = vsel %vm185, 0.0, %v244
    %247 = vrot.lane.b32.xlu0 %v129, 127
    %v248 = vpop.permute.xlu0 %247
    %v250 = vsel %vm190, %v248, 0.0
    %v251 = vstv %s134
    %v252 = vmul.f32 %v251, %v246
    %v253 = vstv %s135
    %v254 = vmul.f32 %v253, %v129
    %v255 = vadd.f32 %v252, %v254
    %v256 = vstv %s136
    %v257 = vmul.f32 %v256, %v250
    %v258 = vadd.f32 %v255, %v257
    %v259 = vadd.f32 %v201, %v258
    %v260 = vstv %s143
    %v261 = vmul.f32 %v260, %v246
    %v262 = vstv %s144
    %v263 = vmul.f32 %v262, %v129
    %v264 = vadd.f32 %v261, %v263
    %v265 = vstv %s145
    %v266 = vmul.f32 %v265, %v250
    %v267 = vadd.f32 %v264, %v266
    %v268 = vadd.f32 %v211, %v267
    %v269 = vstv %s152
    %v270 = vmul.f32 %v269, %v246
    %v271 = vstv %s153
    %v272 = vmul.f32 %v271, %v129
    %v273 = vadd.f32 %v270, %v272
    %v274 = vstv %s154
    %v275 = vmul.f32 %v274, %v250
    %v276 = vadd.f32 %v273, %v275
    %v277 = vadd.f32 %v221, %v276
    %v278 = vstv %s161
    %v279 = vmul.f32 %v278, %v246
    %v280 = vstv %s162
    %v281 = vmul.f32 %v280, %v129
    %v282 = vadd.f32 %v279, %v281
    %v283 = vstv %s163
    %v284 = vmul.f32 %v283, %v250
    %v285 = vadd.f32 %v282, %v284
    %v286 = vadd.f32 %v231, %v285
    %v287 = vstv %s170
    %v288 = vmul.f32 %v287, %v246
    %v289 = vstv %s171
    %v290 = vmul.f32 %v289, %v129
    %v291 = vadd.f32 %v288, %v290
    %v292 = vstv %s172
    %v293 = vmul.f32 %v292, %v250
    %v294 = vadd.f32 %v291, %v293
    %v295 = vadd.f32 %v241, %v294
    %297 = vrot.lane.b32.xlu0 %v130, 1
    %v298 = vpop.permute.xlu0 %297
    %v300 = vsel %vm185, 0.0, %v298
    %301 = vrot.lane.b32.xlu0 %v130, 127
    %v302 = vpop.permute.xlu0 %301
    %v304 = vsel %vm190, %v302, 0.0
    %v305 = vstv %s137
    %v306 = vmul.f32 %v305, %v300
    %v307 = vstv %s138
    %v308 = vmul.f32 %v307, %v130
    %v309 = vadd.f32 %v306, %v308
    %v310 = vstv %s139
    %v311 = vmul.f32 %v310, %v304
    %v312 = vadd.f32 %v309, %v311
    %v313 = vadd.f32 %v259, %v312
    %v314 = vstv %s146
    %v315 = vmul.f32 %v314, %v300
    %v316 = vstv %s147
    %v317 = vmul.f32 %v316, %v130
    %v318 = vadd.f32 %v315, %v317
    %v319 = vstv %s148
    %v320 = vmul.f32 %v319, %v304
    %v321 = vadd.f32 %v318, %v320
    %v322 = vadd.f32 %v268, %v321
    %v323 = vstv %s155
    %v324 = vmul.f32 %v323, %v300
    %v325 = vstv %s156
    %v326 = vmul.f32 %v325, %v130
    %v327 = vadd.f32 %v324, %v326
    %v328 = vstv %s157
    %v329 = vmul.f32 %v328, %v304
    %v330 = vadd.f32 %v327, %v329
    %v331 = vadd.f32 %v277, %v330
    %v332 = vstv %s164
    %v333 = vmul.f32 %v332, %v300
    %v334 = vstv %s165
    %v335 = vmul.f32 %v334, %v130
    %v336 = vadd.f32 %v333, %v335
    %v337 = vstv %s166
    %v338 = vmul.f32 %v337, %v304
    %v339 = vadd.f32 %v336, %v338
    %v340 = vadd.f32 %v286, %v339
    %v341 = vstv %s173
    %v342 = vmul.f32 %v341, %v300
    %v343 = vstv %s174
    %v344 = vmul.f32 %v343, %v130
    %v345 = vadd.f32 %v342, %v344
    %v346 = vstv %s175
    %v347 = vmul.f32 %v346, %v304
    %v348 = vadd.f32 %v345, %v347
    %v349 = vadd.f32 %v295, %v348
    %v350 = vmax.f32 %v313, 0.0
    %v351 = vmax.f32 %v322, 0.0
    %v352 = vmax.f32 %v331, 0.0
    %v353 = vmax.f32 %v340, 0.0
    %v354 = vmax.f32 %v349, 0.0
    %s355 = sld [smem:[#allocation13]]
    %s356 = sld [smem:[#allocation13 + $0x1]]
    %s357 = sld [smem:[#allocation13 + $0x2]]
    %s358 = sld [smem:[#allocation13 + $0x3]]
    %s359 = sld [smem:[#allocation13 + $0x4]]
    %s360 = sld [smem:[#allocation13 + $0x5]]
    %s361 = sld [smem:[#allocation13 + $0x6]]
    %s362 = sld [smem:[#allocation13 + $0x7]]
    %s363 = sld [smem:[#allocation13 + $0x8]]
    %s364 = sld [smem:[#allocation13 + $0x9]]
    %s365 = sld [smem:[#allocation13 + $0xa]]
    %s366 = sld [smem:[#allocation13 + $0xb]]
    %s367 = sld [smem:[#allocation13 + $0xc]]
    %s368 = sld [smem:[#allocation13 + $0xd]]
    %s369 = sld [smem:[#allocation13 + $0xe]]
    %s370 = sld [smem:[#allocation13 + $0xf]]
    %s371 = sld [smem:[#allocation13 + $0x10]]
    %s372 = sld [smem:[#allocation13 + $0x11]]
    %s373 = sld [smem:[#allocation13 + $0x12]]
    %s374 = sld [smem:[#allocation13 + $0x13]]
    %s375 = sld [smem:[#allocation13 + $0x14]]
    %s376 = sld [smem:[#allocation13 + $0x15]]
    %s377 = sld [smem:[#allocation13 + $0x16]]
    %s378 = sld [smem:[#allocation13 + $0x17]]
    %s379 = sld [smem:[#allocation13 + $0x18]]
    %s380 = sld [smem:[#allocation13 + $0x19]]
    %s381 = sld [smem:[#allocation13 + $0x1a]]
    %s382 = sld [smem:[#allocation13 + $0x1b]]
    %s383 = sld [smem:[#allocation13 + $0x1c]]
    %s384 = sld [smem:[#allocation13 + $0x1d]]
    %s385 = sld [smem:[#allocation13 + $0x1e]]
    %s386 = sld [smem:[#allocation13 + $0x1f]]
    %s387 = sld [smem:[#allocation13 + $0x20]]
    %s388 = sld [smem:[#allocation13 + $0x21]]
    %s389 = sld [smem:[#allocation13 + $0x22]]
    %s390 = sld [smem:[#allocation13 + $0x23]]
    %s391 = sld [smem:[#allocation13 + $0x24]]
    %s392 = sld [smem:[#allocation13 + $0x25]]
    %s393 = sld [smem:[#allocation13 + $0x26]]
    %s394 = sld [smem:[#allocation13 + $0x27]]
    %s395 = sld [smem:[#allocation13 + $0x28]]
    %s396 = sld [smem:[#allocation13 + $0x29]]
    %s397 = sld [smem:[#allocation13 + $0x2a]]
    %s398 = sld [smem:[#allocation13 + $0x2b]]
    %s399 = sld [smem:[#allocation13 + $0x2c]]
    %s400 = sld [smem:[#allocation13 + $0x2d]]
    %s401 = sld [smem:[#allocation13 + $0x2e]]
    %s402 = sld [smem:[#allocation13 + $0x2f]]
    %s403 = sld [smem:[#allocation13 + $0x30]]
    %s404 = sld [smem:[#allocation13 + $0x31]]
    %s405 = sld [smem:[#allocation13 + $0x32]]
    %s406 = sld [smem:[#allocation13 + $0x33]]
    %s407 = sld [smem:[#allocation13 + $0x34]]
    %s408 = sld [smem:[#allocation13 + $0x35]]
    %s409 = sld [smem:[#allocation13 + $0x36]]
    %s410 = sld [smem:[#allocation13 + $0x37]]
    %s411 = sld [smem:[#allocation13 + $0x38]]
    %s412 = sld [smem:[#allocation13 + $0x39]]
    %s413 = sld [smem:[#allocation13 + $0x3a]]
    %s414 = sld [smem:[#allocation13 + $0x3b]]
    %s415 = sld [smem:[#allocation13 + $0x3c]]
    %s416 = sld [smem:[#allocation13 + $0x3d]]
    %s417 = sld [smem:[#allocation13 + $0x3e]]
    %s418 = sld [smem:[#allocation13 + $0x3f]]
    %s419 = sld [smem:[#allocation13 + $0x40]]
    %s420 = sld [smem:[#allocation13 + $0x41]]
    %s421 = sld [smem:[#allocation13 + $0x42]]
    %s422 = sld [smem:[#allocation13 + $0x43]]
    %s423 = sld [smem:[#allocation13 + $0x44]]
    %s424 = sld [smem:[#allocation13 + $0x45]]
    %s425 = sld [smem:[#allocation13 + $0x46]]
    %s426 = sld [smem:[#allocation13 + $0x47]]
    %s427 = sld [smem:[#allocation13 + $0x48]]
    %s428 = sld [smem:[#allocation13 + $0x49]]
    %s429 = sld [smem:[#allocation13 + $0x4a]]
    %s430 = sld [smem:[#allocation14]]
    %s431 = sld [smem:[#allocation14 + $0x1]]
    %s432 = sld [smem:[#allocation14 + $0x2]]
    %s433 = sld [smem:[#allocation14 + $0x3]]
    %s434 = sld [smem:[#allocation14 + $0x4]]
    %436 = vrot.lane.b32.xlu0 %v350, 1
    %v437 = vpop.permute.xlu0 %436
    %v439 = vsel %vm185, 0.0, %v437
    %440 = vrot.lane.b32.xlu0 %v350, 127
    %v441 = vpop.permute.xlu0 %440
    %v443 = vsel %vm190, %v441, 0.0
    %v444 = vstv %s355
    %v445 = vmul.f32 %v444, %v439
    %v446 = vstv %s356
    %v447 = vmul.f32 %v446, %v350
    %v448 = vadd.f32 %v445, %v447
    %v449 = vstv %s357
    %v450 = vmul.f32 %v449, %v443
    %v451 = vadd.f32 %v448, %v450
    %v452 = vstv %s430
    %v453 = vadd.f32 %v451, %v452
    %v454 = vstv %s370
    %v455 = vmul.f32 %v454, %v439
    %v456 = vstv %s371
    %v457 = vmul.f32 %v456, %v350
    %v458 = vadd.f32 %v455, %v457
    %v459 = vstv %s372
    %v460 = vmul.f32 %v459, %v443
    %v461 = vadd.f32 %v458, %v460
    %v462 = vstv %s431
    %v463 = vadd.f32 %v461, %v462
    %v464 = vstv %s385
    %v465 = vmul.f32 %v464, %v439
    %v466 = vstv %s386
    %v467 = vmul.f32 %v466, %v350
    %v468 = vadd.f32 %v465, %v467
    %v469 = vstv %s387
    %v470 = vmul.f32 %v469, %v443
    %v471 = vadd.f32 %v468, %v470
    %v472 = vstv %s432
    %v473 = vadd.f32 %v471, %v472
    %v474 = vstv %s400
    %v475 = vmul.f32 %v474, %v439
    %v476 = vstv %s401
    %v477 = vmul.f32 %v476, %v350
    %v478 = vadd.f32 %v475, %v477
    %v479 = vstv %s402
    %v480 = vmul.f32 %v479, %v443
    %v481 = vadd.f32 %v478, %v480
    %v482 = vstv %s433
    %v483 = vadd.f32 %v481, %v482
    %v484 = vstv %s415
    %v485 = vmul.f32 %v484, %v439
    %v486 = vstv %s416
    %v487 = vmul.f32 %v486, %v350
    %v488 = vadd.f32 %v485, %v487
    %v489 = vstv %s417
    %v490 = vmul.f32 %v489, %v443
    %v491 = vadd.f32 %v488, %v490
    %v492 = vstv %s434
    %v493 = vadd.f32 %v491, %v492
    %495 = vrot.lane.b32.xlu0 %v351, 1
    %v496 = vpop.permute.xlu0 %495
    %v498 = vsel %vm185, 0.0, %v496
    %499 = vrot.lane.b32.xlu0 %v351, 127
    %v500 = vpop.permute.xlu0 %499
    %v502 = vsel %vm190, %v500, 0.0
    %v503 = vstv %s358
    %v504 = vmul.f32 %v503, %v498
    %v505 = vstv %s359
    %v506 = vmul.f32 %v505, %v351
    %v507 = vadd.f32 %v504, %v506
    %v508 = vstv %s360
    %v509 = vmul.f32 %v508, %v502
    %v510 = vadd.f32 %v507, %v509
    %v511 = vadd.f32 %v453, %v510
    %v512 = vstv %s373
    %v513 = vmul.f32 %v512, %v498
    %v514 = vstv %s374
    %v515 = vmul.f32 %v514, %v351
    %v516 = vadd.f32 %v513, %v515
    %v517 = vstv %s375
    %v518 = vmul.f32 %v517, %v502
    %v519 = vadd.f32 %v516, %v518
    %v520 = vadd.f32 %v463, %v519
    %v521 = vstv %s388
    %v522 = vmul.f32 %v521, %v498
    %v523 = vstv %s389
    %v524 = vmul.f32 %v523, %v351
    %v525 = vadd.f32 %v522, %v524
    %v526 = vstv %s390
    %v527 = vmul.f32 %v526, %v502
    %v528 = vadd.f32 %v525, %v527
    %v529 = vadd.f32 %v473, %v528
    %v530 = vstv %s403
    %v531 = vmul.f32 %v530, %v498
    %v532 = vstv %s404
    %v533 = vmul.f32 %v532, %v351
    %v534 = vadd.f32 %v531, %v533
    %v535 = vstv %s405
    %v536 = vmul.f32 %v535, %v502
    %v537 = vadd.f32 %v534, %v536
    %v538 = vadd.f32 %v483, %v537
    %v539 = vstv %s418
    %v540 = vmul.f32 %v539, %v498
    %v541 = vstv %s419
    %v542 = vmul.f32 %v541, %v351
    %v543 = vadd.f32 %v540, %v542
    %v544 = vstv %s420
    %v545 = vmul.f32 %v544, %v502
    %v546 = vadd.f32 %v543, %v545
    %v547 = vadd.f32 %v493, %v546
    %549 = vrot.lane.b32.xlu0 %v352, 1
    %v550 = vpop.permute.xlu0 %549
    %v552 = vsel %vm185, 0.0, %v550
    %553 = vrot.lane.b32.xlu0 %v352, 127
    %v554 = vpop.permute.xlu0 %553
    %v556 = vsel %vm190, %v554, 0.0
    %v557 = vstv %s361
    %v558 = vmul.f32 %v557, %v552
    %v559 = vstv %s362
    %v560 = vmul.f32 %v559, %v352
    %v561 = vadd.f32 %v558, %v560
    %v562 = vstv %s363
    %v563 = vmul.f32 %v562, %v556
    %v564 = vadd.f32 %v561, %v563
    %v565 = vadd.f32 %v511, %v564
    %v566 = vstv %s376
    %v567 = vmul.f32 %v566, %v552
    %v568 = vstv %s377
    %v569 = vmul.f32 %v568, %v352
    %v570 = vadd.f32 %v567, %v569
    %v571 = vstv %s378
    %v572 = vmul.f32 %v571, %v556
    %v573 = vadd.f32 %v570, %v572
    %v574 = vadd.f32 %v520, %v573
    %v575 = vstv %s391
    %v576 = vmul.f32 %v575, %v552
    %v577 = vstv %s392
    %v578 = vmul.f32 %v577, %v352
    %v579 = vadd.f32 %v576, %v578
    %v580 = vstv %s393
    %v581 = vmul.f32 %v580, %v556
    %v582 = vadd.f32 %v579, %v581
    %v583 = vadd.f32 %v529, %v582
    %v584 = vstv %s406
    %v585 = vmul.f32 %v584, %v552
    %v586 = vstv %s407
    %v587 = vmul.f32 %v586, %v352
    %v588 = vadd.f32 %v585, %v587
    %v589 = vstv %s408
    %v590 = vmul.f32 %v589, %v556
    %v591 = vadd.f32 %v588, %v590
    %v592 = vadd.f32 %v538, %v591
    %v593 = vstv %s421
    %v594 = vmul.f32 %v593, %v552
    %v595 = vstv %s422
    %v596 = vmul.f32 %v595, %v352
    %v597 = vadd.f32 %v594, %v596
    %v598 = vstv %s423
    %v599 = vmul.f32 %v598, %v556
    %v600 = vadd.f32 %v597, %v599
    %v601 = vadd.f32 %v547, %v600
    %603 = vrot.lane.b32.xlu0 %v353, 1
    %v604 = vpop.permute.xlu0 %603
    %v606 = vsel %vm185, 0.0, %v604
    %607 = vrot.lane.b32.xlu0 %v353, 127
    %v608 = vpop.permute.xlu0 %607
    %v610 = vsel %vm190, %v608, 0.0
    %v611 = vstv %s364
    %v612 = vmul.f32 %v611, %v606
    %v613 = vstv %s365
    %v614 = vmul.f32 %v613, %v353
    %v615 = vadd.f32 %v612, %v614
    %v616 = vstv %s366
    %v617 = vmul.f32 %v616, %v610
    %v618 = vadd.f32 %v615, %v617
    %v619 = vadd.f32 %v565, %v618
    %v620 = vstv %s379
    %v621 = vmul.f32 %v620, %v606
    %v622 = vstv %s380
    %v623 = vmul.f32 %v622, %v353
    %v624 = vadd.f32 %v621, %v623
    %v625 = vstv %s381
    %v626 = vmul.f32 %v625, %v610
    %v627 = vadd.f32 %v624, %v626
    %v628 = vadd.f32 %v574, %v627
    %v629 = vstv %s394
    %v630 = vmul.f32 %v629, %v606
    %v631 = vstv %s395
    %v632 = vmul.f32 %v631, %v353
    %v633 = vadd.f32 %v630, %v632
    %v634 = vstv %s396
    %v635 = vmul.f32 %v634, %v610
    %v636 = vadd.f32 %v633, %v635
    %v637 = vadd.f32 %v583, %v636
    %v638 = vstv %s409
    %v639 = vmul.f32 %v638, %v606
    %v640 = vstv %s410
    %v641 = vmul.f32 %v640, %v353
    %v642 = vadd.f32 %v639, %v641
    %v643 = vstv %s411
    %v644 = vmul.f32 %v643, %v610
    %v645 = vadd.f32 %v642, %v644
    %v646 = vadd.f32 %v592, %v645
    %v647 = vstv %s424
    %v648 = vmul.f32 %v647, %v606
    %v649 = vstv %s425
    %v650 = vmul.f32 %v649, %v353
    %v651 = vadd.f32 %v648, %v650
    %v652 = vstv %s426
    %v653 = vmul.f32 %v652, %v610
    %v654 = vadd.f32 %v651, %v653
    %v655 = vadd.f32 %v601, %v654
    %657 = vrot.lane.b32.xlu0 %v354, 1
    %v658 = vpop.permute.xlu0 %657
    %v660 = vsel %vm185, 0.0, %v658
    %661 = vrot.lane.b32.xlu0 %v354, 127
    %v662 = vpop.permute.xlu0 %661
    %v664 = vsel %vm190, %v662, 0.0
    %v665 = vstv %s367
    %v666 = vmul.f32 %v665, %v660
    %v667 = vstv %s368
    %v668 = vmul.f32 %v667, %v354
    %v669 = vadd.f32 %v666, %v668
    %v670 = vstv %s369
    %v671 = vmul.f32 %v670, %v664
    %v672 = vadd.f32 %v669, %v671
    %v673 = vadd.f32 %v619, %v672
    %v674 = vstv %s382
    %v675 = vmul.f32 %v674, %v660
    %v676 = vstv %s383
    %v677 = vmul.f32 %v676, %v354
    %v678 = vadd.f32 %v675, %v677
    %v679 = vstv %s384
    %v680 = vmul.f32 %v679, %v664
    %v681 = vadd.f32 %v678, %v680
    %v682 = vadd.f32 %v628, %v681
    %v683 = vstv %s397
    %v684 = vmul.f32 %v683, %v660
    %v685 = vstv %s398
    %v686 = vmul.f32 %v685, %v354
    %v687 = vadd.f32 %v684, %v686
    %v688 = vstv %s399
    %v689 = vmul.f32 %v688, %v664
    %v690 = vadd.f32 %v687, %v689
    %v691 = vadd.f32 %v637, %v690
    %v692 = vstv %s412
    %v693 = vmul.f32 %v692, %v660
    %v694 = vstv %s413
    %v695 = vmul.f32 %v694, %v354
    %v696 = vadd.f32 %v693, %v695
    %v697 = vstv %s414
    %v698 = vmul.f32 %v697, %v664
    %v699 = vadd.f32 %v696, %v698
    %v700 = vadd.f32 %v646, %v699
    %v701 = vstv %s427
    %v702 = vmul.f32 %v701, %v660
    %v703 = vstv %s428
    %v704 = vmul.f32 %v703, %v354
    %v705 = vadd.f32 %v702, %v704
    %v706 = vstv %s429
    %v707 = vmul.f32 %v706, %v664
    %v708 = vadd.f32 %v705, %v707
    %v709 = vadd.f32 %v655, %v708
    %v710 = vmax.f32 %v673, 0.0
    %v711 = vmax.f32 %v682, 0.0
    %v712 = vmax.f32 %v691, 0.0
    %v713 = vmax.f32 %v700, 0.0
    %v714 = vmax.f32 %v709, 0.0
    %s715 = sld [smem:[#allocation16]]
    %s716 = sld [smem:[#allocation16 + $0x1]]
    %s717 = sld [smem:[#allocation16 + $0x2]]
    %s718 = sld [smem:[#allocation16 + $0x3]]
    %s719 = sld [smem:[#allocation16 + $0x4]]
    %s720 = sld [smem:[#allocation16 + $0x5]]
    %s721 = sld [smem:[#allocation16 + $0x6]]
    %s722 = sld [smem:[#allocation16 + $0x7]]
    %s723 = sld [smem:[#allocation16 + $0x8]]
    %s724 = sld [smem:[#allocation16 + $0x9]]
    %s725 = sld [smem:[#allocation16 + $0xa]]
    %s726 = sld [smem:[#allocation16 + $0xb]]
    %s727 = sld [smem:[#allocation16 + $0xc]]
    %s728 = sld [smem:[#allocation16 + $0xd]]
    %s729 = sld [smem:[#allocation16 + $0xe]]
    %s730 = sld [smem:[#allocation2]]
    %v731 = vstv %s715
    %v732 = vmul.f32 %v731, %v710
    %v733 = vstv %s716
    %v734 = vmul.f32 %v733, %v710
    %v735 = vstv %s717
    %v736 = vmul.f32 %v735, %v710
    %v737 = vstv %s718
    %v738 = vmul.f32 %v737, %v711
    %v739 = vadd.f32 %v732, %v738
    %v740 = vstv %s719
    %v741 = vmul.f32 %v740, %v711
    %v742 = vadd.f32 %v734, %v741
    %v743 = vstv %s720
    %v744 = vmul.f32 %v743, %v711
    %v745 = vadd.f32 %v736, %v744
    %v746 = vstv %s721
    %v747 = vmul.f32 %v746, %v712
    %v748 = vadd.f32 %v739, %v747
    %v749 = vstv %s722
    %v750 = vmul.f32 %v749, %v712
    %v751 = vadd.f32 %v742, %v750
    %v752 = vstv %s723
    %v753 = vmul.f32 %v752, %v712
    %v754 = vadd.f32 %v745, %v753
    %v755 = vstv %s724
    %v756 = vmul.f32 %v755, %v713
    %v757 = vadd.f32 %v748, %v756
    %v758 = vstv %s725
    %v759 = vmul.f32 %v758, %v713
    %v760 = vadd.f32 %v751, %v759
    %v761 = vstv %s726
    %v762 = vmul.f32 %v761, %v713
    %v763 = vadd.f32 %v754, %v762
    %v764 = vstv %s727
    %v765 = vmul.f32 %v764, %v714
    %v766 = vadd.f32 %v757, %v765
    %v767 = vstv %s728
    %v768 = vmul.f32 %v767, %v714
    %v769 = vadd.f32 %v760, %v768
    %v770 = vstv %s729
    %v771 = vmul.f32 %v770, %v714
    %v772 = vadd.f32 %v763, %v771
    %774 = vrot.lane.b32.xlu0 %v766, 1
    %v775 = vpop.permute.xlu0 %774
    %v777 = vsel %vm185, 0.0, %v775
    %v778 = vadd.f32 %v777, %v769
    %780 = vrot.lane.b32.xlu0 %v772, 127
    %v781 = vpop.permute.xlu0 %780
    %v783 = vsel %vm190, %v781, 0.0
    %v784 = vadd.f32 %v778, %v783
    %v785 = vstv %s730
    %v786 = vadd.f32 %v784, %v785
    %v787 = vadd.f32 %v786, %v128
    %788 = vst [vmem:[#allocation17] sm:$0xff] %v787
    // Predicated region
    $region70: #{tpu_custom_call.1} parent=1 // pred_check
      _
    $region71: #{tpu_custom_call.1} parent=1 // pred_check_branch
      %790 = sbr.rel (0) target = $region73
    $region72: #{tpu_custom_call.1} parent=1 // pred_region
      %s792 = ssub.s32 128, 128
      %793 = vsyncadd [#allocation5], %s792
      %s795 = sshll.u32 [#allocation17], 4
      %s796 = int_to_ptr.vmem [resolvable:$true] %s795
      %798 = dma.vmem_to_hbm [thread:$0]  %s796, 128, %s9, [#allocation5]
    $region73: #{tpu_custom_call.1} parent=1 // pred_fallthru
      _
    // Predicated region
    $region74: #{tpu_custom_call.1} parent=1 // pred_check
      _
    $region75: #{tpu_custom_call.1} parent=1 // pred_check_branch
      %800 = sbr.rel (0) target = $region77
    $region76: #{tpu_custom_call.1} parent=1 // pred_region
      %801 = dma.done [#allocation5], 128
    $region77: #{tpu_custom_call.1} parent=1 // pred_fallthru
      _
    %802 = vsyncpa [#allocation4], 1
    %803 = vsyncpa [#allocation8], 1
    %804 = vsyncpa [#allocation5], 1
    %805 = vsyncpa [#allocation6], 1
    %806 = vsyncpa [#allocation12], 1
    %807 = vsyncpa [#allocation15], 1

</llo_original>
